<compile_context>
chip_gen: v6e
topology: v6e:2x2x1
jax: 0.10.0
libtpu: 0.0.40
codegen_flags: <defaults>
</compile_context>

<pallas_src>
import math
from functools import partial

import jax
import jax.numpy as jnp
from jax.experimental import pallas as pl
from jax.experimental.pallas import tpu as pltpu


# --------------------------------------------------------------------------
# small math helpers (f32 elementwise)
# --------------------------------------------------------------------------
def _layernorm(x, gamma, beta, eps=1e-5):
    mu = jnp.mean(x, axis=-1, keepdims=True)
    var = jnp.mean(jnp.square(x - mu), axis=-1, keepdims=True)
    return (x - mu) * jax.lax.rsqrt(var + eps) * gamma + beta


_SQRT_2_OVER_PI = math.sqrt(2.0 / math.pi)


def _gelu_tanh(x):
    # tanh-approximate GELU (single EUP op); |err| vs exact erf < ~1e-3.
    return 0.5 * x * (1.0 + jnp.tanh(_SQRT_2_OVER_PI * (x + 0.044715 * x * x * x)))


def _gelu_exact(x):
    # PyTorch nn.GELU() default (exact, erf based) -- used by the reference.
    return 0.5 * x * (1.0 + jax.lax.erf(x * (1.0 / math.sqrt(2.0))))


# --------------------------------------------------------------------------
# Pallas kernel
# --------------------------------------------------------------------------
def sevit_kernel(num_heads, seq_len, block_b,
                 x_ref,
                 se_w1, se_b1, se_w2, se_b2,
                 g1, b1,
                 w_qkv, b_qkv, wo, bo,
                 g2, b2,
                 mw1, mb1, mw2, mb2,
                 o_ref):
    R, D = x_ref.shape                       # R = block_b * seq_len
    hd = D // num_heads
    f32, bf16 = jnp.float32, jnp.bfloat16

    def mm(a, w_ref, b_ref=None):
        # bf16 MXU operands, f32 accumulation; bias add stays f32.
        y = jnp.dot(a.astype(bf16), w_ref[...], preferred_element_type=f32)
        if b_ref is not None:
            y = y + b_ref[...]
        return y

    x = x_ref[...].astype(f32)               # (R, D) residual stream, f32

    # ---- cls-row mask, (R,1) only (the (R,R) block-diagonal seq mask is gone;
    #      this tiny comparison chain avoids relying on vector int div/rem). ---
    row = jax.lax.broadcasted_iota(jnp.int32, (R, 1), 0)
    is_cls = row == 0
    for s in range(1, block_b):
        is_cls = is_cls | (row == s * seq_len)

    # ---- SE gate (cls rows keep gate 1.0) ---------------------------------
    hse = jnp.maximum(mm(x, se_w1, se_b1), 0.0)
    gate = jax.nn.sigmoid(mm(hse, se_w2, se_b2))                  # (R, 1)
    x = x * jnp.where(is_cls, jnp.float32(1.0), gate)
    x_res = x

    # ---- norm1 + fused QKV projection (one (D,3D) MXU matmul) -------------
    xn = _layernorm(x, g1[...], b1[...])
    qkv = mm(xn, w_qkv, b_qkv)                                    # (R, 3D) f32
    scale = jnp.float32(1.0 / math.sqrt(hd))
    q16 = (qkv[:, 0:D] * scale).astype(bf16)                      # cast once
    k16 = qkv[:, D:2 * D].astype(bf16)
    v16 = qkv[:, 2 * D:3 * D].astype(bf16)

    # ---- attention: per-sequence (N,N) scores, per-head hd-wide slices ----
    ctx_rows = []
    for s in range(block_b):                     # static row slices
        r0, r1 = s * seq_len, (s + 1) * seq_len
        head_outs = []
        for h in range(num_heads):               # static lane slices
            c0, c1 = h * hd, (h + 1) * hd
            qh = q16[r0:r1, c0:c1]               # (N, hd) bf16
            kh = k16[r0:r1, c0:c1]
            vh = v16[r0:r1, c0:c1]
            sc = jax.lax.dot_general(qh, kh, (((1,), (1,)), ((), ())),
                                     preferred_element_type=f32)  # (N, N)
            m = jnp.max(sc, axis=-1, keepdims=True)
            e = jnp.exp(sc - m)
            p = e * pl.reciprocal(jnp.sum(e, axis=-1, keepdims=True), approx=True)
            head_outs.append(jnp.dot(p.astype(bf16), vh,
                                     preferred_element_type=f32))  # (N, hd)
        ctx_rows.append(jnp.concatenate(head_outs, axis=-1))       # (N, D)
    ctx = jnp.concatenate(ctx_rows, axis=0)                        # (R, D)

    x = x_res + mm(ctx, wo, bo)

    # ---- norm2 + MLP (GELU output cast to bf16 right away) ----------------
    xn2 = _layernorm(x, g2[...], b2[...])
    h1 = _gelu_tanh(mm(xn2, mw1, mb1)).astype(bf16)                # (R, hidden)
    out = x + (jnp.dot(h1, mw2[...], preferred_element_type=f32) + mb2[...])

    o_ref[...] = out.astype(o_ref.dtype)


# --------------------------------------------------------------------------
# wrapper
# --------------------------------------------------------------------------
def sevit_block(x, params, num_heads, *, block_b=None, vmem_limit_bytes=None):
    B, N, D = x.shape
    assert D % num_heads == 0
    bf16, f32 = jnp.bfloat16, jnp.float32
    hidden = params["mw1"].shape[1]

    # Pack params: bf16 for MXU operands, f32 for bias / LN elementwise use.
    w_qkv = jnp.concatenate([params["wq"], params["wk"], params["wv"]], axis=1)
    b_qkv = jnp.concatenate([params["bq"], params["bk"], params["bv"]], axis=1)
    packed = [
        params["se_w1"].astype(bf16), params["se_b1"].astype(f32),
        params["se_w2"].astype(bf16), params["se_b2"].astype(f32),
        params["g1"].astype(f32), params["b1"].astype(f32),
        w_qkv.astype(bf16), b_qkv.astype(f32),
        params["wo"].astype(bf16), params["bo"].astype(f32),
        params["g2"].astype(f32), params["b2"].astype(f32),
        params["mw1"].astype(bf16), params["mb1"].astype(f32),
        params["mw2"].astype(bf16), params["mb2"].astype(f32),
    ]
    weight_bytes = sum(int(p.size) * p.dtype.itemsize for p in packed)
    x_isz = jnp.dtype(x.dtype).itemsize

    def est_bytes(bb):
        rows = bb * N
        io = 2 * rows * D * (2 * x_isz)             # in + out, double buffered
        act = rows * (3 * D + 6 * D + hidden) * 4   # rough f32 activation temps
        attn = bb * N * N * 4 * 2                   # per-seq score temps (margin)
        return weight_bytes + io + act + attn

    if block_b is None:
        budget = 24 * 1024 * 1024                   # safe on v5e/v6e/v7x VMEM
        # Prefer >=2 grid steps (both v7x TensorCores) with the largest
        # sublane-aligned row block that fits the budget.
        cands = [bb for bb in range(1, B)
                 if B % bb == 0 and (bb * N) % 8 == 0 and (B // bb) >= 2]
        fitting = [bb for bb in cands if est_bytes(bb) <= budget]
        block_b = max(fitting) if fitting else B    # fallback: single step
    assert B % block_b == 0
    rows = block_b * N
    assert rows == B * N or rows % 8 == 0, "row block must be sublane aligned"

    if vmem_limit_bytes is None:
        # Size from the estimate instead of a flat 48 MiB (v7x has 64 MiB/TC).
        vmem_limit_bytes = min(max(4 * est_bytes(block_b), 16 * 1024 * 1024),
                               40 * 1024 * 1024)

    x2 = x.reshape(B * N, D)
    in_specs = [pl.BlockSpec((rows, D), lambda i: (i, 0))]
    # Weights live whole in VMEM (constant index -> fetched once, no per-step
    # double buffering across the batch grid).
    in_specs += [pl.BlockSpec(memory_space=pltpu.MemorySpace.VMEM)] * len(packed)

    out = pl.pallas_call(
        partial(sevit_kernel, num_heads, N, block_b),
        grid=(B // block_b,),
        in_specs=in_specs,
        out_specs=pl.BlockSpec((rows, D), lambda i: (i, 0)),
        out_shape=jax.ShapeDtypeStruct((B * N, D), x.dtype),
        compiler_params=pltpu.CompilerParams(
            dimension_semantics=("parallel",),
            vmem_limit_bytes=int(vmem_limit_bytes),
        ),
    )(x2, *packed)
    return out.reshape(B, N, D)


# --------------------------------------------------------------------------
# parameter init + pure-JAX f32 reference (mirrors the PyTorch module)
# --------------------------------------------------------------------------
def init_params(key, dim, mlp_ratio=4.0, reduction=16):
    hidden = int(dim * mlp_ratio)
    dr = dim // reduction
    ks = jax.random.split(key, 10)

    def w(k, shape, scale=0.05):
        return jax.random.normal(k, shape, jnp.float32) * scale

    return {
        "se_w1": w(ks[0], (dim, dr), 0.2),
        "se_b1": jnp.full((1, dr), 0.01, jnp.float32),
        "se_w2": w(ks[1], (dr, 1), 0.2),
        "se_b2": jnp.zeros((1, 1), jnp.float32),
        "g1": jnp.ones((1, dim), jnp.float32),
        "b1": jnp.zeros((1, dim), jnp.float32),
        "wq": w(ks[2], (dim, dim)),
        "wk": w(ks[3], (dim, dim)),
        "wv": w(ks[4], (dim, dim)),
        "bq": jnp.zeros((1, dim), jnp.float32),
        "bk": jnp.zeros((1, dim), jnp.float32),
        "bv": jnp.zeros((1, dim), jnp.float32),
        "wo": w(ks[5], (dim, dim)),
        "bo": jnp.zeros((1, dim), jnp.float32),
        "g2": jnp.ones((1, dim), jnp.float32),
        "b2": jnp.zeros((1, dim), jnp.float32),
        "mw1": w(ks[6], (dim, hidden)),
        "mb1": jnp.full((1, hidden), 0.01, jnp.float32),
        "mw2": w(ks[7], (hidden, dim)),
        "mb2": jnp.zeros((1, dim), jnp.float32),
    }


def reference(x, p, num_heads):
    """Faithful f32 / exact-GELU reference of the PyTorch SEViTBlock."""
    B, N, D = x.shape
    hd = D // num_heads
    scale = 1.0 / math.sqrt(hd)

    def one(xs):                                         # xs: (N, D)
        cls_tok, img = xs[:1], xs[1:]
        h = jnp.maximum(img @ p["se_w1"] + p["se_b1"], 0.0)
        w = jax.nn.sigmoid(h @ p["se_w2"] + p["se_b2"])
        xg = jnp.concatenate([cls_tok, img * w], axis=0)
        x_res = xg
        xn = _layernorm(xg, p["g1"], p["b1"])
        q = xn @ p["wq"] + p["bq"]
        k = xn @ p["wk"] + p["bk"]
        v = xn @ p["wv"] + p["bv"]
        outs = []
        for hh in range(num_heads):
            sl = slice(hh * hd, (hh + 1) * hd)
            s = (q[:, sl] * scale) @ k[:, sl].T
            prob = jax.nn.softmax(s, axis=-1)
            outs.append(prob @ v[:, sl])
        attn = jnp.concatenate(outs, axis=-1) @ p["wo"] + p["bo"]
        xa = x_res + attn
        xn2 = _layernorm(xa, p["g2"], p["b2"])
        h1 = _gelu_exact(xn2 @ p["mw1"] + p["mb1"])
        return xa + (h1 @ p["mw2"] + p["mb2"])

    return jax.vmap(one)(x)


# --------------------------------------------------------------------------
if __name__ == "__main__":
    B, N, D = 2, 9, 32          # 1 cls token + 8 image tokens
    num_heads = 4               # head_dim = 8
    key = jax.random.PRNGKey(0)
    kx, kp = jax.random.split(key)

    x = jax.random.normal(kx, (B, N, D), jnp.float32)
    params = init_params(kp, D, mlp_ratio=4.0, reduction=16)

    out = sevit_block(x, params, num_heads)
    out = jax.block_until_ready(out)

    ref = reference(x, params, num_heads)
    max_err = float(jnp.max(jnp.abs(out - ref)))
    # Tolerance covers bf16 MXU operands, tanh-GELU and the approx reciprocal.
    if not math.isfinite(max_err) or max_err > 2e-2:
        raise AssertionError(f"kernel mismatch, max abs err = {max_err}")
    print("KERNEL_OK")
</pallas_src>

<mosaic_0001>
module attributes {stable_mosaic.version = 11 : i64} {
  func.func @sevit_kernel(%arg0: i32, %arg1: memref<18x32xf32, #tpu.memory_space<vmem>>, %arg2: memref<32x2xbf16, #tpu.memory_space<vmem>>, %arg3: memref<1x2xf32, #tpu.memory_space<vmem>>, %arg4: memref<2x1xbf16, #tpu.memory_space<vmem>>, %arg5: memref<1x1xf32, #tpu.memory_space<vmem>>, %arg6: memref<1x32xf32, #tpu.memory_space<vmem>>, %arg7: memref<1x32xf32, #tpu.memory_space<vmem>>, %arg8: memref<32x96xbf16, #tpu.memory_space<vmem>>, %arg9: memref<1x96xf32, #tpu.memory_space<vmem>>, %arg10: memref<32x32xbf16, #tpu.memory_space<vmem>>, %arg11: memref<1x32xf32, #tpu.memory_space<vmem>>, %arg12: memref<1x32xf32, #tpu.memory_space<vmem>>, %arg13: memref<1x32xf32, #tpu.memory_space<vmem>>, %arg14: memref<32x128xbf16, #tpu.memory_space<vmem>>, %arg15: memref<1x128xf32, #tpu.memory_space<vmem>>, %arg16: memref<128x32xbf16, #tpu.memory_space<vmem>>, %arg17: memref<1x32xf32, #tpu.memory_space<vmem>>, %arg18: memref<18x32xf32, #tpu.memory_space<vmem>>) attributes {dimension_semantics = [#tpu.dimension_semantics<parallel>], iteration_bounds = array<i64: 1>, scalar_prefetch = 0 : i64, scratch_operands = 0 : i64, tpu.core_type = #tpu.core_type<tc>, window_params = [{transform_indices = @transform_0, window_bounds = array<i64: 18, 32>}, {pipeline_mode = #tpu.pipeline_mode<synchronous>, transform_indices = @transform_1, window_bounds = array<i64: 32, 2>}, {pipeline_mode = #tpu.pipeline_mode<synchronous>, transform_indices = @transform_2, window_bounds = array<i64: 1, 2>}, {pipeline_mode = #tpu.pipeline_mode<synchronous>, transform_indices = @transform_3, window_bounds = array<i64: 2, 1>}, {pipeline_mode = #tpu.pipeline_mode<synchronous>, transform_indices = @transform_4, window_bounds = array<i64: 1, 1>}, {pipeline_mode = #tpu.pipeline_mode<synchronous>, transform_indices = @transform_5, window_bounds = array<i64: 1, 32>}, {pipeline_mode = #tpu.pipeline_mode<synchronous>, transform_indices = @transform_6, window_bounds = array<i64: 1, 32>}, {pipeline_mode = #tpu.pipeline_mode<synchronous>, transform_indices = @transform_7, window_bounds = array<i64: 32, 96>}, {pipeline_mode = #tpu.pipeline_mode<synchronous>, transform_indices = @transform_8, window_bounds = array<i64: 1, 96>}, {pipeline_mode = #tpu.pipeline_mode<synchronous>, transform_indices = @transform_9, window_bounds = array<i64: 32, 32>}, {pipeline_mode = #tpu.pipeline_mode<synchronous>, transform_indices = @transform_10, window_bounds = array<i64: 1, 32>}, {pipeline_mode = #tpu.pipeline_mode<synchronous>, transform_indices = @transform_11, window_bounds = array<i64: 1, 32>}, {pipeline_mode = #tpu.pipeline_mode<synchronous>, transform_indices = @transform_12, window_bounds = array<i64: 1, 32>}, {pipeline_mode = #tpu.pipeline_mode<synchronous>, transform_indices = @transform_13, window_bounds = array<i64: 32, 128>}, {pipeline_mode = #tpu.pipeline_mode<synchronous>, transform_indices = @transform_14, window_bounds = array<i64: 1, 128>}, {pipeline_mode = #tpu.pipeline_mode<synchronous>, transform_indices = @transform_15, window_bounds = array<i64: 128, 32>}, {pipeline_mode = #tpu.pipeline_mode<synchronous>, transform_indices = @transform_16, window_bounds = array<i64: 1, 32>}, {transform_indices = @transform_17, window_bounds = array<i64: 18, 32>}]} {
    %c0 = arith.constant 0 : index
    %c0_0 = arith.constant 0 : index
    %0 = vector.load %arg1[%c0, %c0_0] : memref<18x32xf32, #tpu.memory_space<vmem>>, vector<18x32xf32>
    %1 = tpu.iota {dimensions = array<i32: 0>} : vector<18x1xi32>
    %c0_i32 = arith.constant 0 : i32
    %2 = vector.broadcast %c0_i32 : i32 to vector<18x1xi32>
    %3 = arith.cmpi eq, %1, %2 : vector<18x1xi32>
    %c9_i32 = arith.constant 9 : i32
    %4 = vector.broadcast %c9_i32 : i32 to vector<18x1xi32>
    %5 = arith.cmpi eq, %1, %4 : vector<18x1xi32>
    %6 = arith.ori %3, %5 : vector<18x1xi1>
    %7 = arith.truncf %0 : vector<18x32xf32> to vector<18x32xbf16>
    %c0_1 = arith.constant 0 : index
    %c0_2 = arith.constant 0 : index
    %8 = vector.load %arg2[%c0_1, %c0_2] : memref<32x2xbf16, #tpu.memory_space<vmem>>, vector<32x2xbf16>
    %cst = arith.constant dense<0.000000e+00> : vector<18x2xf32>
    %9 = tpu.matmul %7, %8, %cst {dimension_numbers = #tpu.dot_dimension_numbers<[1], [0], [0], [1], [0, 0, 1, 1], [], []>} : vector<18x32xbf16>, vector<32x2xbf16>, vector<18x2xf32> -> vector<18x2xf32>
    %c0_3 = arith.constant 0 : index
    %c0_4 = arith.constant 0 : index
    %10 = vector.load %arg3[%c0_3, %c0_4] : memref<1x2xf32, #tpu.memory_space<vmem>>, vector<1x2xf32>
    %11 = vector.broadcast %10 : vector<1x2xf32> to vector<18x2xf32>
    %12 = arith.addf %9, %11 : vector<18x2xf32>
    %cst_5 = arith.constant 0.000000e+00 : f32
    %13 = vector.broadcast %cst_5 : f32 to vector<18x2xf32>
    %14 = arith.maximumf %12, %13 : vector<18x2xf32>
    %15 = arith.truncf %14 : vector<18x2xf32> to vector<18x2xbf16>
    %c0_6 = arith.constant 0 : index
    %c0_7 = arith.constant 0 : index
    %16 = vector.load %arg4[%c0_6, %c0_7] : memref<2x1xbf16, #tpu.memory_space<vmem>>, vector<2x1xbf16>
    %cst_8 = arith.constant dense<0.000000e+00> : vector<18x1xf32>
    %17 = tpu.matmul %15, %16, %cst_8 {dimension_numbers = #tpu.dot_dimension_numbers<[1], [0], [0], [1], [0, 0, 1, 1], [], []>} : vector<18x2xbf16>, vector<2x1xbf16>, vector<18x1xf32> -> vector<18x1xf32>
    %c0_9 = arith.constant 0 : index
    %c0_10 = arith.constant 0 : index
    %18 = vector.load %arg5[%c0_9, %c0_10] : memref<1x1xf32, #tpu.memory_space<vmem>>, vector<1x1xf32>
    %19 = vector.broadcast %18 : vector<1x1xf32> to vector<18x1xf32>
    %20 = arith.addf %17, %19 : vector<18x1xf32>
    %21 = arith.negf %20 : vector<18x1xf32>
    %22 = math.exp %21 : vector<18x1xf32>
    %cst_11 = arith.constant 1.000000e+00 : f32
    %23 = vector.broadcast %cst_11 : f32 to vector<18x1xf32>
    %24 = arith.addf %23, %22 : vector<18x1xf32>
    %25 = arith.divf %23, %24 : vector<18x1xf32>
    %cst_12 = arith.constant 1.000000e+00 : f32
    %26 = vector.broadcast %cst_12 : f32 to vector<18x1xf32>
    %27 = arith.select %6, %26, %25 : vector<18x1xi1>, vector<18x1xf32>
    %28 = vector.broadcast %27 : vector<18x1xf32> to vector<18x32xf32>
    %29 = arith.mulf %0, %28 : vector<18x32xf32>
    %c0_13 = arith.constant 0 : index
    %c0_14 = arith.constant 0 : index
    %30 = vector.load %arg6[%c0_13, %c0_14] : memref<1x32xf32, #tpu.memory_space<vmem>>, vector<1x32xf32>
    %c0_15 = arith.constant 0 : index
    %c0_16 = arith.constant 0 : index
    %31 = vector.load %arg7[%c0_15, %c0_16] : memref<1x32xf32, #tpu.memory_space<vmem>>, vector<1x32xf32>
    %cst_17 = arith.constant dense<0.000000e+00> : vector<18xf32>
    %32 = vector.multi_reduction <add>, %29, %cst_17 [1] : vector<18x32xf32> to vector<18xf32>
    %33 = vector.shape_cast %32 : vector<18xf32> to vector<18x1xf32>
    %cst_18 = arith.constant 3.200000e+01 : f32
    %34 = vector.broadcast %cst_18 : f32 to vector<18x1xf32>
    %35 = arith.divf %33, %34 : vector<18x1xf32>
    %36 = vector.broadcast %35 : vector<18x1xf32> to vector<18x32xf32>
    %37 = arith.subf %29, %36 : vector<18x32xf32>
    %38 = arith.mulf %37, %37 : vector<18x32xf32>
    %cst_19 = arith.constant dense<0.000000e+00> : vector<18xf32>
    %39 = vector.multi_reduction <add>, %38, %cst_19 [1] : vector<18x32xf32> to vector<18xf32>
    %40 = vector.shape_cast %39 : vector<18xf32> to vector<18x1xf32>
    %cst_20 = arith.constant 3.200000e+01 : f32
    %41 = vector.broadcast %cst_20 : f32 to vector<18x1xf32>
    %42 = arith.divf %40, %41 : vector<18x1xf32>
    %43 = vector.broadcast %35 : vector<18x1xf32> to vector<18x32xf32>
    %44 = arith.subf %29, %43 : vector<18x32xf32>
    %cst_21 = arith.constant 9.99999974E-6 : f32
    %45 = vector.broadcast %cst_21 : f32 to vector<18x1xf32>
    %46 = arith.addf %42, %45 : vector<18x1xf32>
    %47 = math.rsqrt %46 : vector<18x1xf32>
    %48 = vector.broadcast %47 : vector<18x1xf32> to vector<18x32xf32>
    %49 = arith.mulf %44, %48 : vector<18x32xf32>
    %50 = vector.broadcast %30 : vector<1x32xf32> to vector<18x32xf32>
    %51 = arith.mulf %49, %50 : vector<18x32xf32>
    %52 = vector.broadcast %31 : vector<1x32xf32> to vector<18x32xf32>
    %53 = arith.addf %51, %52 : vector<18x32xf32>
    %54 = arith.truncf %53 : vector<18x32xf32> to vector<18x32xbf16>
    %c0_22 = arith.constant 0 : index
    %c0_23 = arith.constant 0 : index
    %55 = vector.load %arg8[%c0_22, %c0_23] : memref<32x96xbf16, #tpu.memory_space<vmem>>, vector<32x96xbf16>
    %cst_24 = arith.constant dense<0.000000e+00> : vector<18x96xf32>
    %56 = tpu.matmul %54, %55, %cst_24 {dimension_numbers = #tpu.dot_dimension_numbers<[1], [0], [0], [1], [0, 0, 1, 1], [], []>} : vector<18x32xbf16>, vector<32x96xbf16>, vector<18x96xf32> -> vector<18x96xf32>
    %c0_25 = arith.constant 0 : index
    %c0_26 = arith.constant 0 : index
    %57 = vector.load %arg9[%c0_25, %c0_26] : memref<1x96xf32, #tpu.memory_space<vmem>>, vector<1x96xf32>
    %58 = vector.broadcast %57 : vector<1x96xf32> to vector<18x96xf32>
    %59 = arith.addf %56, %58 : vector<18x96xf32>
    %60 = vector.extract_strided_slice %59 {offsets = [0, 0], sizes = [18, 32], strides = [1, 1]} : vector<18x96xf32> to vector<18x32xf32>
    %cst_27 = arith.constant 0.353553385 : f32
    %61 = vector.broadcast %cst_27 : f32 to vector<18x32xf32>
    %62 = arith.mulf %60, %61 : vector<18x32xf32>
    %63 = arith.truncf %62 : vector<18x32xf32> to vector<18x32xbf16>
    %64 = vector.extract_strided_slice %59 {offsets = [0, 32], sizes = [18, 32], strides = [1, 1]} : vector<18x96xf32> to vector<18x32xf32>
    %65 = arith.truncf %64 : vector<18x32xf32> to vector<18x32xbf16>
    %66 = vector.extract_strided_slice %59 {offsets = [0, 64], sizes = [18, 32], strides = [1, 1]} : vector<18x96xf32> to vector<18x32xf32>
    %67 = arith.truncf %66 : vector<18x32xf32> to vector<18x32xbf16>
    %68 = vector.extract_strided_slice %63 {offsets = [0, 0], sizes = [9, 8], strides = [1, 1]} : vector<18x32xbf16> to vector<9x8xbf16>
    %69 = vector.extract_strided_slice %65 {offsets = [0, 0], sizes = [9, 8], strides = [1, 1]} : vector<18x32xbf16> to vector<9x8xbf16>
    %70 = vector.extract_strided_slice %67 {offsets = [0, 0], sizes = [9, 8], strides = [1, 1]} : vector<18x32xbf16> to vector<9x8xbf16>
    %cst_28 = arith.constant dense<0.000000e+00> : vector<9x9xf32>
    %71 = tpu.matmul %68, %69, %cst_28 {dimension_numbers = #tpu.dot_dimension_numbers<[1], [1], [0], [0], [0, 0, 1, 0], [], []>} : vector<9x8xbf16>, vector<9x8xbf16>, vector<9x9xf32> -> vector<9x9xf32>
    %cst_29 = arith.constant dense<0xFF800000> : vector<9xf32>
    %72 = vector.multi_reduction <maximumf>, %71, %cst_29 [1] : vector<9x9xf32> to vector<9xf32>
    %73 = vector.shape_cast %72 : vector<9xf32> to vector<9x1xf32>
    %74 = vector.broadcast %73 : vector<9x1xf32> to vector<9x9xf32>
    %75 = arith.subf %71, %74 : vector<9x9xf32>
    %76 = math.exp %75 : vector<9x9xf32>
    %cst_30 = arith.constant dense<0.000000e+00> : vector<9xf32>
    %77 = vector.multi_reduction <add>, %76, %cst_30 [1] : vector<9x9xf32> to vector<9xf32>
    %78 = vector.shape_cast %77 : vector<9xf32> to vector<9x1xf32>
    %79 = tpu.reciprocal %78 {approx = true} : vector<9x1xf32> -> vector<9x1xf32>
    %80 = vector.broadcast %79 : vector<9x1xf32> to vector<9x9xf32>
    %81 = arith.mulf %76, %80 : vector<9x9xf32>
    %82 = arith.truncf %81 : vector<9x9xf32> to vector<9x9xbf16>
    %cst_31 = arith.constant dense<0.000000e+00> : vector<9x8xf32>
    %83 = tpu.matmul %82, %70, %cst_31 {dimension_numbers = #tpu.dot_dimension_numbers<[1], [0], [0], [1], [0, 0, 1, 1], [], []>} : vector<9x9xbf16>, vector<9x8xbf16>, vector<9x8xf32> -> vector<9x8xf32>
    %84 = vector.extract_strided_slice %63 {offsets = [0, 8], sizes = [9, 8], strides = [1, 1]} : vector<18x32xbf16> to vector<9x8xbf16>
    %85 = vector.extract_strided_slice %65 {offsets = [0, 8], sizes = [9, 8], strides = [1, 1]} : vector<18x32xbf16> to vector<9x8xbf16>
    %86 = vector.extract_strided_slice %67 {offsets = [0, 8], sizes = [9, 8], strides = [1, 1]} : vector<18x32xbf16> to vector<9x8xbf16>
    %cst_32 = arith.constant dense<0.000000e+00> : vector<9x9xf32>
    %87 = tpu.matmul %84, %85, %cst_32 {dimension_numbers = #tpu.dot_dimension_numbers<[1], [1], [0], [0], [0, 0, 1, 0], [], []>} : vector<9x8xbf16>, vector<9x8xbf16>, vector<9x9xf32> -> vector<9x9xf32>
    %cst_33 = arith.constant dense<0xFF800000> : vector<9xf32>
    %88 = vector.multi_reduction <maximumf>, %87, %cst_33 [1] : vector<9x9xf32> to vector<9xf32>
    %89 = vector.shape_cast %88 : vector<9xf32> to vector<9x1xf32>
    %90 = vector.broadcast %89 : vector<9x1xf32> to vector<9x9xf32>
    %91 = arith.subf %87, %90 : vector<9x9xf32>
    %92 = math.exp %91 : vector<9x9xf32>
    %cst_34 = arith.constant dense<0.000000e+00> : vector<9xf32>
    %93 = vector.multi_reduction <add>, %92, %cst_34 [1] : vector<9x9xf32> to vector<9xf32>
    %94 = vector.shape_cast %93 : vector<9xf32> to vector<9x1xf32>
    %95 = tpu.reciprocal %94 {approx = true} : vector<9x1xf32> -> vector<9x1xf32>
    %96 = vector.broadcast %95 : vector<9x1xf32> to vector<9x9xf32>
    %97 = arith.mulf %92, %96 : vector<9x9xf32>
    %98 = arith.truncf %97 : vector<9x9xf32> to vector<9x9xbf16>
    %cst_35 = arith.constant dense<0.000000e+00> : vector<9x8xf32>
    %99 = tpu.matmul %98, %86, %cst_35 {dimension_numbers = #tpu.dot_dimension_numbers<[1], [0], [0], [1], [0, 0, 1, 1], [], []>} : vector<9x9xbf16>, vector<9x8xbf16>, vector<9x8xf32> -> vector<9x8xf32>
    %100 = vector.extract_strided_slice %63 {offsets = [0, 16], sizes = [9, 8], strides = [1, 1]} : vector<18x32xbf16> to vector<9x8xbf16>
    %101 = vector.extract_strided_slice %65 {offsets = [0, 16], sizes = [9, 8], strides = [1, 1]} : vector<18x32xbf16> to vector<9x8xbf16>
    %102 = vector.extract_strided_slice %67 {offsets = [0, 16], sizes = [9, 8], strides = [1, 1]} : vector<18x32xbf16> to vector<9x8xbf16>
    %cst_36 = arith.constant dense<0.000000e+00> : vector<9x9xf32>
    %103 = tpu.matmul %100, %101, %cst_36 {dimension_numbers = #tpu.dot_dimension_numbers<[1], [1], [0], [0], [0, 0, 1, 0], [], []>} : vector<9x8xbf16>, vector<9x8xbf16>, vector<9x9xf32> -> vector<9x9xf32>
    %cst_37 = arith.constant dense<0xFF800000> : vector<9xf32>
    %104 = vector.multi_reduction <maximumf>, %103, %cst_37 [1] : vector<9x9xf32> to vector<9xf32>
    %105 = vector.shape_cast %104 : vector<9xf32> to vector<9x1xf32>
    %106 = vector.broadcast %105 : vector<9x1xf32> to vector<9x9xf32>
    %107 = arith.subf %103, %106 : vector<9x9xf32>
    %108 = math.exp %107 : vector<9x9xf32>
    %cst_38 = arith.constant dense<0.000000e+00> : vector<9xf32>
    %109 = vector.multi_reduction <add>, %108, %cst_38 [1] : vector<9x9xf32> to vector<9xf32>
    %110 = vector.shape_cast %109 : vector<9xf32> to vector<9x1xf32>
    %111 = tpu.reciprocal %110 {approx = true} : vector<9x1xf32> -> vector<9x1xf32>
    %112 = vector.broadcast %111 : vector<9x1xf32> to vector<9x9xf32>
    %113 = arith.mulf %108, %112 : vector<9x9xf32>
    %114 = arith.truncf %113 : vector<9x9xf32> to vector<9x9xbf16>
    %cst_39 = arith.constant dense<0.000000e+00> : vector<9x8xf32>
    %115 = tpu.matmul %114, %102, %cst_39 {dimension_numbers = #tpu.dot_dimension_numbers<[1], [0], [0], [1], [0, 0, 1, 1], [], []>} : vector<9x9xbf16>, vector<9x8xbf16>, vector<9x8xf32> -> vector<9x8xf32>
    %116 = vector.extract_strided_slice %63 {offsets = [0, 24], sizes = [9, 8], strides = [1, 1]} : vector<18x32xbf16> to vector<9x8xbf16>
    %117 = vector.extract_strided_slice %65 {offsets = [0, 24], sizes = [9, 8], strides = [1, 1]} : vector<18x32xbf16> to vector<9x8xbf16>
    %118 = vector.extract_strided_slice %67 {offsets = [0, 24], sizes = [9, 8], strides = [1, 1]} : vector<18x32xbf16> to vector<9x8xbf16>
    %cst_40 = arith.constant dense<0.000000e+00> : vector<9x9xf32>
    %119 = tpu.matmul %116, %117, %cst_40 {dimension_numbers = #tpu.dot_dimension_numbers<[1], [1], [0], [0], [0, 0, 1, 0], [], []>} : vector<9x8xbf16>, vector<9x8xbf16>, vector<9x9xf32> -> vector<9x9xf32>
    %cst_41 = arith.constant dense<0xFF800000> : vector<9xf32>
    %120 = vector.multi_reduction <maximumf>, %119, %cst_41 [1] : vector<9x9xf32> to vector<9xf32>
    %121 = vector.shape_cast %120 : vector<9xf32> to vector<9x1xf32>
    %122 = vector.broadcast %121 : vector<9x1xf32> to vector<9x9xf32>
    %123 = arith.subf %119, %122 : vector<9x9xf32>
    %124 = math.exp %123 : vector<9x9xf32>
    %cst_42 = arith.constant dense<0.000000e+00> : vector<9xf32>
    %125 = vector.multi_reduction <add>, %124, %cst_42 [1] : vector<9x9xf32> to vector<9xf32>
    %126 = vector.shape_cast %125 : vector<9xf32> to vector<9x1xf32>
    %127 = tpu.reciprocal %126 {approx = true} : vector<9x1xf32> -> vector<9x1xf32>
    %128 = vector.broadcast %127 : vector<9x1xf32> to vector<9x9xf32>
    %129 = arith.mulf %124, %128 : vector<9x9xf32>
    %130 = arith.truncf %129 : vector<9x9xf32> to vector<9x9xbf16>
    %cst_43 = arith.constant dense<0.000000e+00> : vector<9x8xf32>
    %131 = tpu.matmul %130, %118, %cst_43 {dimension_numbers = #tpu.dot_dimension_numbers<[1], [0], [0], [1], [0, 0, 1, 1], [], []>} : vector<9x9xbf16>, vector<9x8xbf16>, vector<9x8xf32> -> vector<9x8xf32>
    %132 = tpu.concatenate %83, %99, %115, %131 in 1 : vector<9x8xf32>, vector<9x8xf32>, vector<9x8xf32>, vector<9x8xf32> -> vector<9x32xf32>
    %133 = vector.extract_strided_slice %63 {offsets = [9, 0], sizes = [9, 8], strides = [1, 1]} : vector<18x32xbf16> to vector<9x8xbf16>
    %134 = vector.extract_strided_slice %65 {offsets = [9, 0], sizes = [9, 8], strides = [1, 1]} : vector<18x32xbf16> to vector<9x8xbf16>
    %135 = vector.extract_strided_slice %67 {offsets = [9, 0], sizes = [9, 8], strides = [1, 1]} : vector<18x32xbf16> to vector<9x8xbf16>
    %cst_44 = arith.constant dense<0.000000e+00> : vector<9x9xf32>
    %136 = tpu.matmul %133, %134, %cst_44 {dimension_numbers = #tpu.dot_dimension_numbers<[1], [1], [0], [0], [0, 0, 1, 0], [], []>} : vector<9x8xbf16>, vector<9x8xbf16>, vector<9x9xf32> -> vector<9x9xf32>
    %cst_45 = arith.constant dense<0xFF800000> : vector<9xf32>
    %137 = vector.multi_reduction <maximumf>, %136, %cst_45 [1] : vector<9x9xf32> to vector<9xf32>
    %138 = vector.shape_cast %137 : vector<9xf32> to vector<9x1xf32>
    %139 = vector.broadcast %138 : vector<9x1xf32> to vector<9x9xf32>
    %140 = arith.subf %136, %139 : vector<9x9xf32>
    %141 = math.exp %140 : vector<9x9xf32>
    %cst_46 = arith.constant dense<0.000000e+00> : vector<9xf32>
    %142 = vector.multi_reduction <add>, %141, %cst_46 [1] : vector<9x9xf32> to vector<9xf32>
    %143 = vector.shape_cast %142 : vector<9xf32> to vector<9x1xf32>
    %144 = tpu.reciprocal %143 {approx = true} : vector<9x1xf32> -> vector<9x1xf32>
    %145 = vector.broadcast %144 : vector<9x1xf32> to vector<9x9xf32>
    %146 = arith.mulf %141, %145 : vector<9x9xf32>
    %147 = arith.truncf %146 : vector<9x9xf32> to vector<9x9xbf16>
    %cst_47 = arith.constant dense<0.000000e+00> : vector<9x8xf32>
    %148 = tpu.matmul %147, %135, %cst_47 {dimension_numbers = #tpu.dot_dimension_numbers<[1], [0], [0], [1], [0, 0, 1, 1], [], []>} : vector<9x9xbf16>, vector<9x8xbf16>, vector<9x8xf32> -> vector<9x8xf32>
    %149 = vector.extract_strided_slice %63 {offsets = [9, 8], sizes = [9, 8], strides = [1, 1]} : vector<18x32xbf16> to vector<9x8xbf16>
    %150 = vector.extract_strided_slice %65 {offsets = [9, 8], sizes = [9, 8], strides = [1, 1]} : vector<18x32xbf16> to vector<9x8xbf16>
    %151 = vector.extract_strided_slice %67 {offsets = [9, 8], sizes = [9, 8], strides = [1, 1]} : vector<18x32xbf16> to vector<9x8xbf16>
    %cst_48 = arith.constant dense<0.000000e+00> : vector<9x9xf32>
    %152 = tpu.matmul %149, %150, %cst_48 {dimension_numbers = #tpu.dot_dimension_numbers<[1], [1], [0], [0], [0, 0, 1, 0], [], []>} : vector<9x8xbf16>, vector<9x8xbf16>, vector<9x9xf32> -> vector<9x9xf32>
    %cst_49 = arith.constant dense<0xFF800000> : vector<9xf32>
    %153 = vector.multi_reduction <maximumf>, %152, %cst_49 [1] : vector<9x9xf32> to vector<9xf32>
    %154 = vector.shape_cast %153 : vector<9xf32> to vector<9x1xf32>
    %155 = vector.broadcast %154 : vector<9x1xf32> to vector<9x9xf32>
    %156 = arith.subf %152, %155 : vector<9x9xf32>
    %157 = math.exp %156 : vector<9x9xf32>
    %cst_50 = arith.constant dense<0.000000e+00> : vector<9xf32>
    %158 = vector.multi_reduction <add>, %157, %cst_50 [1] : vector<9x9xf32> to vector<9xf32>
    %159 = vector.shape_cast %158 : vector<9xf32> to vector<9x1xf32>
    %160 = tpu.reciprocal %159 {approx = true} : vector<9x1xf32> -> vector<9x1xf32>
    %161 = vector.broadcast %160 : vector<9x1xf32> to vector<9x9xf32>
    %162 = arith.mulf %157, %161 : vector<9x9xf32>
    %163 = arith.truncf %162 : vector<9x9xf32> to vector<9x9xbf16>
    %cst_51 = arith.constant dense<0.000000e+00> : vector<9x8xf32>
    %164 = tpu.matmul %163, %151, %cst_51 {dimension_numbers = #tpu.dot_dimension_numbers<[1], [0], [0], [1], [0, 0, 1, 1], [], []>} : vector<9x9xbf16>, vector<9x8xbf16>, vector<9x8xf32> -> vector<9x8xf32>
    %165 = vector.extract_strided_slice %63 {offsets = [9, 16], sizes = [9, 8], strides = [1, 1]} : vector<18x32xbf16> to vector<9x8xbf16>
    %166 = vector.extract_strided_slice %65 {offsets = [9, 16], sizes = [9, 8], strides = [1, 1]} : vector<18x32xbf16> to vector<9x8xbf16>
    %167 = vector.extract_strided_slice %67 {offsets = [9, 16], sizes = [9, 8], strides = [1, 1]} : vector<18x32xbf16> to vector<9x8xbf16>
    %cst_52 = arith.constant dense<0.000000e+00> : vector<9x9xf32>
    %168 = tpu.matmul %165, %166, %cst_52 {dimension_numbers = #tpu.dot_dimension_numbers<[1], [1], [0], [0], [0, 0, 1, 0], [], []>} : vector<9x8xbf16>, vector<9x8xbf16>, vector<9x9xf32> -> vector<9x9xf32>
    %cst_53 = arith.constant dense<0xFF800000> : vector<9xf32>
    %169 = vector.multi_reduction <maximumf>, %168, %cst_53 [1] : vector<9x9xf32> to vector<9xf32>
    %170 = vector.shape_cast %169 : vector<9xf32> to vector<9x1xf32>
    %171 = vector.broadcast %170 : vector<9x1xf32> to vector<9x9xf32>
    %172 = arith.subf %168, %171 : vector<9x9xf32>
    %173 = math.exp %172 : vector<9x9xf32>
    %cst_54 = arith.constant dense<0.000000e+00> : vector<9xf32>
    %174 = vector.multi_reduction <add>, %173, %cst_54 [1] : vector<9x9xf32> to vector<9xf32>
    %175 = vector.shape_cast %174 : vector<9xf32> to vector<9x1xf32>
    %176 = tpu.reciprocal %175 {approx = true} : vector<9x1xf32> -> vector<9x1xf32>
    %177 = vector.broadcast %176 : vector<9x1xf32> to vector<9x9xf32>
    %178 = arith.mulf %173, %177 : vector<9x9xf32>
    %179 = arith.truncf %178 : vector<9x9xf32> to vector<9x9xbf16>
    %cst_55 = arith.constant dense<0.000000e+00> : vector<9x8xf32>
    %180 = tpu.matmul %179, %167, %cst_55 {dimension_numbers = #tpu.dot_dimension_numbers<[1], [0], [0], [1], [0, 0, 1, 1], [], []>} : vector<9x9xbf16>, vector<9x8xbf16>, vector<9x8xf32> -> vector<9x8xf32>
    %181 = vector.extract_strided_slice %63 {offsets = [9, 24], sizes = [9, 8], strides = [1, 1]} : vector<18x32xbf16> to vector<9x8xbf16>
    %182 = vector.extract_strided_slice %65 {offsets = [9, 24], sizes = [9, 8], strides = [1, 1]} : vector<18x32xbf16> to vector<9x8xbf16>
    %183 = vector.extract_strided_slice %67 {offsets = [9, 24], sizes = [9, 8], strides = [1, 1]} : vector<18x32xbf16> to vector<9x8xbf16>
    %cst_56 = arith.constant dense<0.000000e+00> : vector<9x9xf32>
    %184 = tpu.matmul %181, %182, %cst_56 {dimension_numbers = #tpu.dot_dimension_numbers<[1], [1], [0], [0], [0, 0, 1, 0], [], []>} : vector<9x8xbf16>, vector<9x8xbf16>, vector<9x9xf32> -> vector<9x9xf32>
    %cst_57 = arith.constant dense<0xFF800000> : vector<9xf32>
    %185 = vector.multi_reduction <maximumf>, %184, %cst_57 [1] : vector<9x9xf32> to vector<9xf32>
    %186 = vector.shape_cast %185 : vector<9xf32> to vector<9x1xf32>
    %187 = vector.broadcast %186 : vector<9x1xf32> to vector<9x9xf32>
    %188 = arith.subf %184, %187 : vector<9x9xf32>
    %189 = math.exp %188 : vector<9x9xf32>
    %cst_58 = arith.constant dense<0.000000e+00> : vector<9xf32>
    %190 = vector.multi_reduction <add>, %189, %cst_58 [1] : vector<9x9xf32> to vector<9xf32>
    %191 = vector.shape_cast %190 : vector<9xf32> to vector<9x1xf32>
    %192 = tpu.reciprocal %191 {approx = true} : vector<9x1xf32> -> vector<9x1xf32>
    %193 = vector.broadcast %192 : vector<9x1xf32> to vector<9x9xf32>
    %194 = arith.mulf %189, %193 : vector<9x9xf32>
    %195 = arith.truncf %194 : vector<9x9xf32> to vector<9x9xbf16>
    %cst_59 = arith.constant dense<0.000000e+00> : vector<9x8xf32>
    %196 = tpu.matmul %195, %183, %cst_59 {dimension_numbers = #tpu.dot_dimension_numbers<[1], [0], [0], [1], [0, 0, 1, 1], [], []>} : vector<9x9xbf16>, vector<9x8xbf16>, vector<9x8xf32> -> vector<9x8xf32>
    %197 = tpu.concatenate %148, %164, %180, %196 in 1 : vector<9x8xf32>, vector<9x8xf32>, vector<9x8xf32>, vector<9x8xf32> -> vector<9x32xf32>
    %198 = tpu.concatenate %132, %197 in 0 : vector<9x32xf32>, vector<9x32xf32> -> vector<18x32xf32>
    %199 = arith.truncf %198 : vector<18x32xf32> to vector<18x32xbf16>
    %c0_60 = arith.constant 0 : index
    %c0_61 = arith.constant 0 : index
    %200 = vector.load %arg10[%c0_60, %c0_61] : memref<32x32xbf16, #tpu.memory_space<vmem>>, vector<32x32xbf16>
    %cst_62 = arith.constant dense<0.000000e+00> : vector<18x32xf32>
    %201 = tpu.matmul %199, %200, %cst_62 {dimension_numbers = #tpu.dot_dimension_numbers<[1], [0], [0], [1], [0, 0, 1, 1], [], []>} : vector<18x32xbf16>, vector<32x32xbf16>, vector<18x32xf32> -> vector<18x32xf32>
    %c0_63 = arith.constant 0 : index
    %c0_64 = arith.constant 0 : index
    %202 = vector.load %arg11[%c0_63, %c0_64] : memref<1x32xf32, #tpu.memory_space<vmem>>, vector<1x32xf32>
    %203 = vector.broadcast %202 : vector<1x32xf32> to vector<18x32xf32>
    %204 = arith.addf %201, %203 : vector<18x32xf32>
    %205 = arith.addf %29, %204 : vector<18x32xf32>
    %c0_65 = arith.constant 0 : index
    %c0_66 = arith.constant 0 : index
    %206 = vector.load %arg12[%c0_65, %c0_66] : memref<1x32xf32, #tpu.memory_space<vmem>>, vector<1x32xf32>
    %c0_67 = arith.constant 0 : index
    %c0_68 = arith.constant 0 : index
    %207 = vector.load %arg13[%c0_67, %c0_68] : memref<1x32xf32, #tpu.memory_space<vmem>>, vector<1x32xf32>
    %cst_69 = arith.constant dense<0.000000e+00> : vector<18xf32>
    %208 = vector.multi_reduction <add>, %205, %cst_69 [1] : vector<18x32xf32> to vector<18xf32>
    %209 = vector.shape_cast %208 : vector<18xf32> to vector<18x1xf32>
    %cst_70 = arith.constant 3.200000e+01 : f32
    %210 = vector.broadcast %cst_70 : f32 to vector<18x1xf32>
    %211 = arith.divf %209, %210 : vector<18x1xf32>
    %212 = vector.broadcast %211 : vector<18x1xf32> to vector<18x32xf32>
    %213 = arith.subf %205, %212 : vector<18x32xf32>
    %214 = arith.mulf %213, %213 : vector<18x32xf32>
    %cst_71 = arith.constant dense<0.000000e+00> : vector<18xf32>
    %215 = vector.multi_reduction <add>, %214, %cst_71 [1] : vector<18x32xf32> to vector<18xf32>
    %216 = vector.shape_cast %215 : vector<18xf32> to vector<18x1xf32>
    %cst_72 = arith.constant 3.200000e+01 : f32
    %217 = vector.broadcast %cst_72 : f32 to vector<18x1xf32>
    %218 = arith.divf %216, %217 : vector<18x1xf32>
    %219 = vector.broadcast %211 : vector<18x1xf32> to vector<18x32xf32>
    %220 = arith.subf %205, %219 : vector<18x32xf32>
    %cst_73 = arith.constant 9.99999974E-6 : f32
    %221 = vector.broadcast %cst_73 : f32 to vector<18x1xf32>
    %222 = arith.addf %218, %221 : vector<18x1xf32>
    %223 = math.rsqrt %222 : vector<18x1xf32>
    %224 = vector.broadcast %223 : vector<18x1xf32> to vector<18x32xf32>
    %225 = arith.mulf %220, %224 : vector<18x32xf32>
    %226 = vector.broadcast %206 : vector<1x32xf32> to vector<18x32xf32>
    %227 = arith.mulf %225, %226 : vector<18x32xf32>
    %228 = vector.broadcast %207 : vector<1x32xf32> to vector<18x32xf32>
    %229 = arith.addf %227, %228 : vector<18x32xf32>
    %230 = arith.truncf %229 : vector<18x32xf32> to vector<18x32xbf16>
    %c0_74 = arith.constant 0 : index
    %c0_75 = arith.constant 0 : index
    %231 = vector.load %arg14[%c0_74, %c0_75] : memref<32x128xbf16, #tpu.memory_space<vmem>>, vector<32x128xbf16>
    %cst_76 = arith.constant dense<0.000000e+00> : vector<18x128xf32>
    %232 = tpu.matmul %230, %231, %cst_76 {dimension_numbers = #tpu.dot_dimension_numbers<[1], [0], [0], [1], [0, 0, 1, 1], [], []>} : vector<18x32xbf16>, vector<32x128xbf16>, vector<18x128xf32> -> vector<18x128xf32>
    %c0_77 = arith.constant 0 : index
    %c0_78 = arith.constant 0 : index
    %233 = vector.load %arg15[%c0_77, %c0_78] : memref<1x128xf32, #tpu.memory_space<vmem>>, vector<1x128xf32>
    %234 = vector.broadcast %233 : vector<1x128xf32> to vector<18x128xf32>
    %235 = arith.addf %232, %234 : vector<18x128xf32>
    %cst_79 = arith.constant 5.000000e-01 : f32
    %236 = vector.broadcast %cst_79 : f32 to vector<18x128xf32>
    %237 = arith.mulf %236, %235 : vector<18x128xf32>
    %cst_80 = arith.constant 4.471500e-02 : f32
    %238 = vector.broadcast %cst_80 : f32 to vector<18x128xf32>
    %239 = arith.mulf %238, %235 : vector<18x128xf32>
    %240 = arith.mulf %239, %235 : vector<18x128xf32>
    %241 = arith.mulf %240, %235 : vector<18x128xf32>
    %242 = arith.addf %235, %241 : vector<18x128xf32>
    %cst_81 = arith.constant 0.797884583 : f32
    %243 = vector.broadcast %cst_81 : f32 to vector<18x128xf32>
    %244 = arith.mulf %243, %242 : vector<18x128xf32>
    %245 = math.tanh %244 : vector<18x128xf32>
    %cst_82 = arith.constant 1.000000e+00 : f32
    %246 = vector.broadcast %cst_82 : f32 to vector<18x128xf32>
    %247 = arith.addf %246, %245 : vector<18x128xf32>
    %248 = arith.mulf %237, %247 : vector<18x128xf32>
    %249 = arith.truncf %248 : vector<18x128xf32> to vector<18x128xbf16>
    %c0_83 = arith.constant 0 : index
    %c0_84 = arith.constant 0 : index
    %250 = vector.load %arg16[%c0_83, %c0_84] : memref<128x32xbf16, #tpu.memory_space<vmem>>, vector<128x32xbf16>
    %cst_85 = arith.constant dense<0.000000e+00> : vector<18x32xf32>
    %251 = tpu.matmul %249, %250, %cst_85 {dimension_numbers = #tpu.dot_dimension_numbers<[1], [0], [0], [1], [0, 0, 1, 1], [], []>} : vector<18x128xbf16>, vector<128x32xbf16>, vector<18x32xf32> -> vector<18x32xf32>
    %c0_86 = arith.constant 0 : index
    %c0_87 = arith.constant 0 : index
    %252 = vector.load %arg17[%c0_86, %c0_87] : memref<1x32xf32, #tpu.memory_space<vmem>>, vector<1x32xf32>
    %253 = vector.broadcast %252 : vector<1x32xf32> to vector<18x32xf32>
    %254 = arith.addf %251, %253 : vector<18x32xf32>
    %255 = arith.addf %205, %254 : vector<18x32xf32>
    %c0_88 = arith.constant 0 : index
    %c0_89 = arith.constant 0 : index
    %256 = vector.load %arg18[%c0_88, %c0_89] : memref<18x32xf32, #tpu.memory_space<vmem>>, vector<18x32xf32>
    tpu.vector_store %arg18[%c0_88, %c0_89], %255 {strides = array<i32>} : memref<18x32xf32, #tpu.memory_space<vmem>>, vector<18x32xf32>,
    return
  }
  func.func @transform_0(%arg0: i32) -> (i32, i32) {
    %c0_i32 = arith.constant 0 : i32
    %c0_i32_0 = arith.constant 0 : i32
    return %arg0, %c0_i32 : i32, i32
  }
  func.func @transform_1(%arg0: i32) -> (i32, i32) {
    %c0_i32 = arith.constant 0 : i32
    %c0_i32_0 = arith.constant 0 : i32
    %c0_i32_1 = arith.constant 0 : i32
    return %c0_i32, %c0_i32_0 : i32, i32
  }
  func.func @transform_2(%arg0: i32) -> (i32, i32) {
    %c0_i32 = arith.constant 0 : i32
    %c0_i32_0 = arith.constant 0 : i32
    %c0_i32_1 = arith.constant 0 : i32
    return %c0_i32, %c0_i32_0 : i32, i32
  }
  func.func @transform_3(%arg0: i32) -> (i32, i32) {
    %c0_i32 = arith.constant 0 : i32
    %c0_i32_0 = arith.constant 0 : i32
    %c0_i32_1 = arith.constant 0 : i32
    return %c0_i32, %c0_i32_0 : i32, i32
  }
  func.func @transform_4(%arg0: i32) -> (i32, i32) {
    %c0_i32 = arith.constant 0 : i32
    %c0_i32_0 = arith.constant 0 : i32
    %c0_i32_1 = arith.constant 0 : i32
    return %c0_i32, %c0_i32_0 : i32, i32
  }
  func.func @transform_5(%arg0: i32) -> (i32, i32) {
    %c0_i32 = arith.constant 0 : i32
    %c0_i32_0 = arith.constant 0 : i32
    %c0_i32_1 = arith.constant 0 : i32
    return %c0_i32, %c0_i32_0 : i32, i32
  }
  func.func @transform_6(%arg0: i32) -> (i32, i32) {
    %c0_i32 = arith.constant 0 : i32
    %c0_i32_0 = arith.constant 0 : i32
    %c0_i32_1 = arith.constant 0 : i32
    return %c0_i32, %c0_i32_0 : i32, i32
  }
  func.func @transform_7(%arg0: i32) -> (i32, i32) {
    %c0_i32 = arith.constant 0 : i32
    %c0_i32_0 = arith.constant 0 : i32
    %c0_i32_1 = arith.constant 0 : i32
    return %c0_i32, %c0_i32_0 : i32, i32
  }
  func.func @transform_8(%arg0: i32) -> (i32, i32) {
    %c0_i32 = arith.constant 0 : i32
    %c0_i32_0 = arith.constant 0 : i32
    %c0_i32_1 = arith.constant 0 : i32
    return %c0_i32, %c0_i32_0 : i32, i32
  }
  func.func @transform_9(%arg0: i32) -> (i32, i32) {
    %c0_i32 = arith.constant 0 : i32
    %c0_i32_0 = arith.constant 0 : i32
    %c0_i32_1 = arith.constant 0 : i32
    return %c0_i32, %c0_i32_0 : i32, i32
  }
  func.func @transform_10(%arg0: i32) -> (i32, i32) {
    %c0_i32 = arith.constant 0 : i32
    %c0_i32_0 = arith.constant 0 : i32
    %c0_i32_1 = arith.constant 0 : i32
    return %c0_i32, %c0_i32_0 : i32, i32
  }
  func.func @transform_11(%arg0: i32) -> (i32, i32) {
    %c0_i32 = arith.constant 0 : i32
    %c0_i32_0 = arith.constant 0 : i32
    %c0_i32_1 = arith.constant 0 : i32
    return %c0_i32, %c0_i32_0 : i32, i32
  }
  func.func @transform_12(%arg0: i32) -> (i32, i32) {
    %c0_i32 = arith.constant 0 : i32
    %c0_i32_0 = arith.constant 0 : i32
    %c0_i32_1 = arith.constant 0 : i32
    return %c0_i32, %c0_i32_0 : i32, i32
  }
  func.func @transform_13(%arg0: i32) -> (i32, i32) {
    %c0_i32 = arith.constant 0 : i32
    %c0_i32_0 = arith.constant 0 : i32
    %c0_i32_1 = arith.constant 0 : i32
    return %c0_i32, %c0_i32_0 : i32, i32
  }
  func.func @transform_14(%arg0: i32) -> (i32, i32) {
    %c0_i32 = arith.constant 0 : i32
    %c0_i32_0 = arith.constant 0 : i32
    %c0_i32_1 = arith.constant 0 : i32
    return %c0_i32, %c0_i32_0 : i32, i32
  }
  func.func @transform_15(%arg0: i32) -> (i32, i32) {
    %c0_i32 = arith.constant 0 : i32
    %c0_i32_0 = arith.constant 0 : i32
    %c0_i32_1 = arith.constant 0 : i32
    return %c0_i32, %c0_i32_0 : i32, i32
  }
  func.func @transform_16(%arg0: i32) -> (i32, i32) {
    %c0_i32 = arith.constant 0 : i32
    %c0_i32_0 = arith.constant 0 : i32
    %c0_i32_1 = arith.constant 0 : i32
    return %c0_i32, %c0_i32_0 : i32, i32
  }
  func.func @transform_17(%arg0: i32) -> (i32, i32) {
    %c0_i32 = arith.constant 0 : i32
    %c0_i32_0 = arith.constant 0 : i32
    return %arg0, %c0_i32 : i32, i32
  }
}

</mosaic_0001>

<llo_original>
// kernel: tpu_custom_call.1
$region0: #{tpu_custom_call.1}
  #allocation0 [shape = 'u32[]', space=smem, size = 0x4, offset = 0x4, fixed_abs, tag = 'smem constant byte address 0x4 - core index']
  #allocation1 [shape = 'u32[144,128]{1,0:T(1,128)}', space=vmem, size = 0x12000, scoped, tag = 'internal scratch']
  #allocation2 [shape = 'f32[1,1]{1,0:T(1,128)S(1)}', space=vmem, size = 0x200, scoped, tag = 'scoped memory for tpu_custom_call.1']
  %s0 = inlined_call_operand.vmem [shape: f32[18,32], index: 0, kind: input, shape index: {}]
  %s1 = inlined_call_operand.vmem [shape: bf16[32,2], index: 1, kind: input, shape index: {}]
  %s2 = inlined_call_operand.vmem [shape: f32[1,2], index: 2, kind: input, shape index: {}]
  %s3 = inlined_call_operand.vmem [shape: bf16[2,1], index: 3, kind: input, shape index: {}]
  %s4 = inlined_call_operand.<no memory space> [shape: f32[1,1], index: 4, kind: input, shape index: {}]
  %s5 = inlined_call_operand.vmem [shape: f32[1,32], index: 5, kind: input, shape index: {}]
  %s6 = inlined_call_operand.vmem [shape: f32[1,32], index: 6, kind: input, shape index: {}]
  %s7 = inlined_call_operand.vmem [shape: bf16[32,96], index: 7, kind: input, shape index: {}]
  %s8 = inlined_call_operand.vmem [shape: f32[1,96], index: 8, kind: input, shape index: {}]
  %s9 = inlined_call_operand.vmem [shape: bf16[32,32], index: 9, kind: input, shape index: {}]
  %s10 = inlined_call_operand.vmem [shape: f32[1,32], index: 10, kind: input, shape index: {}]
  %s11 = inlined_call_operand.vmem [shape: f32[1,32], index: 11, kind: input, shape index: {}]
  %s12 = inlined_call_operand.vmem [shape: f32[1,32], index: 12, kind: input, shape index: {}]
  %s13 = inlined_call_operand.vmem [shape: bf16[32,128], index: 13, kind: input, shape index: {}]
  %s14 = inlined_call_operand.vmem [shape: f32[1,128], index: 14, kind: input, shape index: {}]
  %s15 = inlined_call_operand.vmem [shape: bf16[128,32], index: 15, kind: input, shape index: {}]
  %s16 = inlined_call_operand.vmem [shape: f32[1,32], index: 16, kind: input, shape index: {}]
  %s17 = inlined_call_operand.hbm [shape: f32[18,32], index: 17, kind: output, shape index: {}]
  %s18 = sld [smem:[#allocation0]]
  $region78: #{tpu_custom_call.1} parent=0
    _
  %s20 = ssub.s32 1, %s18
  %s21 = scalar_select 0, %s20, %s18
  %v22 = vstv %s4
  %23 = vst [vmem:[#allocation2] sm:$0x1] %v22
  $region1: #{tpu_custom_call.1} parent=0
    #allocation3 [shape = 'u8[12288]{0}', space=vmem, size = 0x3000, scoped, tag = 'output window, operand 0, single buffered']
    #allocation4 [shape = 's32[1]{0}', space=sflag, size = 0x4, scoped, tag = 'scoped memory for tpu_custom_call.1']
    %24 = vsyncpa [#allocation4], 0
    // Predicated region
    $region2: #{tpu_custom_call.1} parent=1 // pred_check
      _
    $region3: #{tpu_custom_call.1} parent=1 // pred_check_branch
      %26 = sbr.rel (0) target = $region5
    $region4: #{tpu_custom_call.1} parent=1 // pred_region
      _
    $region5: #{tpu_custom_call.1} parent=1 // pred_fallthru
      _
    // Predicated region
    $region6: #{tpu_custom_call.1} parent=1 // pred_check
      _
    $region7: #{tpu_custom_call.1} parent=1 // pred_check_branch
      %28 = sbr.rel (0) target = $region9
    $region8: #{tpu_custom_call.1} parent=1 // pred_region
      _
    $region9: #{tpu_custom_call.1} parent=1 // pred_fallthru
      _
    // Predicated region
    $region10: #{tpu_custom_call.1} parent=1 // pred_check
      _
    $region11: #{tpu_custom_call.1} parent=1 // pred_check_branch
      %30 = sbr.rel (0) target = $region13
    $region12: #{tpu_custom_call.1} parent=1 // pred_region
      _
    $region13: #{tpu_custom_call.1} parent=1 // pred_fallthru
      _
    // Predicated region
    $region14: #{tpu_custom_call.1} parent=1 // pred_check
      _
    $region15: #{tpu_custom_call.1} parent=1 // pred_check_branch
      %32 = sbr.rel (0) target = $region17
    $region16: #{tpu_custom_call.1} parent=1 // pred_region
      _
    $region17: #{tpu_custom_call.1} parent=1 // pred_fallthru
      _
    // Predicated region
    $region18: #{tpu_custom_call.1} parent=1 // pred_check
      _
    $region19: #{tpu_custom_call.1} parent=1 // pred_check_branch
      %34 = sbr.rel (0) target = $region21
    $region20: #{tpu_custom_call.1} parent=1 // pred_region
      _
    $region21: #{tpu_custom_call.1} parent=1 // pred_fallthru
      _
    // Predicated region
    $region22: #{tpu_custom_call.1} parent=1 // pred_check
      _
    $region23: #{tpu_custom_call.1} parent=1 // pred_check_branch
      %36 = sbr.rel (0) target = $region25
    $region24: #{tpu_custom_call.1} parent=1 // pred_region
      _
    $region25: #{tpu_custom_call.1} parent=1 // pred_fallthru
      _
    // Predicated region
    $region26: #{tpu_custom_call.1} parent=1 // pred_check
      _
    $region27: #{tpu_custom_call.1} parent=1 // pred_check_branch
      %38 = sbr.rel (0) target = $region29
    $region28: #{tpu_custom_call.1} parent=1 // pred_region
      _
    $region29: #{tpu_custom_call.1} parent=1 // pred_fallthru
      _
    // Predicated region
    $region30: #{tpu_custom_call.1} parent=1 // pred_check
      _
    $region31: #{tpu_custom_call.1} parent=1 // pred_check_branch
      %40 = sbr.rel (0) target = $region33
    $region32: #{tpu_custom_call.1} parent=1 // pred_region
      _
    $region33: #{tpu_custom_call.1} parent=1 // pred_fallthru
      _
    // Predicated region
    $region34: #{tpu_custom_call.1} parent=1 // pred_check
      _
    $region35: #{tpu_custom_call.1} parent=1 // pred_check_branch
      %42 = sbr.rel (0) target = $region37
    $region36: #{tpu_custom_call.1} parent=1 // pred_region
      _
    $region37: #{tpu_custom_call.1} parent=1 // pred_fallthru
      _
    // Predicated region
    $region38: #{tpu_custom_call.1} parent=1 // pred_check
      _
    $region39: #{tpu_custom_call.1} parent=1 // pred_check_branch
      %44 = sbr.rel (0) target = $region41
    $region40: #{tpu_custom_call.1} parent=1 // pred_region
      _
    $region41: #{tpu_custom_call.1} parent=1 // pred_fallthru
      _
    // Predicated region
    $region42: #{tpu_custom_call.1} parent=1 // pred_check
      _
    $region43: #{tpu_custom_call.1} parent=1 // pred_check_branch
      %46 = sbr.rel (0) target = $region45
    $region44: #{tpu_custom_call.1} parent=1 // pred_region
      _
    $region45: #{tpu_custom_call.1} parent=1 // pred_fallthru
      _
    // Predicated region
    $region46: #{tpu_custom_call.1} parent=1 // pred_check
      _
    $region47: #{tpu_custom_call.1} parent=1 // pred_check_branch
      %48 = sbr.rel (0) target = $region49
    $region48: #{tpu_custom_call.1} parent=1 // pred_region
      _
    $region49: #{tpu_custom_call.1} parent=1 // pred_fallthru
      _
    // Predicated region
    $region50: #{tpu_custom_call.1} parent=1 // pred_check
      _
    $region51: #{tpu_custom_call.1} parent=1 // pred_check_branch
      %50 = sbr.rel (0) target = $region53
    $region52: #{tpu_custom_call.1} parent=1 // pred_region
      _
    $region53: #{tpu_custom_call.1} parent=1 // pred_fallthru
      _
    // Predicated region
    $region54: #{tpu_custom_call.1} parent=1 // pred_check
      _
    $region55: #{tpu_custom_call.1} parent=1 // pred_check_branch
      %52 = sbr.rel (0) target = $region57
    $region56: #{tpu_custom_call.1} parent=1 // pred_region
      _
    $region57: #{tpu_custom_call.1} parent=1 // pred_fallthru
      _
    // Predicated region
    $region58: #{tpu_custom_call.1} parent=1 // pred_check
      _
    $region59: #{tpu_custom_call.1} parent=1 // pred_check_branch
      %54 = sbr.rel (0) target = $region61
    $region60: #{tpu_custom_call.1} parent=1 // pred_region
      _
    $region61: #{tpu_custom_call.1} parent=1 // pred_fallthru
      _
    // Predicated region
    $region62: #{tpu_custom_call.1} parent=1 // pred_check
      _
    $region63: #{tpu_custom_call.1} parent=1 // pred_check_branch
      %56 = sbr.rel (0) target = $region65
    $region64: #{tpu_custom_call.1} parent=1 // pred_region
      _
    $region65: #{tpu_custom_call.1} parent=1 // pred_fallthru
      _
    // Predicated region
    $region66: #{tpu_custom_call.1} parent=1 // pred_check
      _
    $region67: #{tpu_custom_call.1} parent=1 // pred_check_branch
      %58 = sbr.rel (0) target = $region69
    $region68: #{tpu_custom_call.1} parent=1 // pred_region
      _
    $region69: #{tpu_custom_call.1} parent=1 // pred_fallthru
      _
    %v60 = vld [vmem:[%s0] sm:$0xff]
    %v61 = vld [vmem:[%s0 + $0x8] sm:$0xff]
    %v62 = vld [vmem:[%s0 + $0x10] sm:$0x3]
    %v63 = vlaneseq
    %v64 = vshrl.u32 %v63, 7
    %v65 = vadd.s32 %v64, 8
    %v66 = vadd.s32 %v64, 16
    %vm67 = vcmp.eq.s32.totalorder %v64, 0
    %vm68 = vcmp.eq.s32.totalorder %v65, 0
    %vm69 = vcmp.eq.s32.totalorder %v66, 0
    %vm70 = vcmp.eq.s32.totalorder %v64, 9
    %vm71 = vcmp.eq.s32.totalorder %v65, 9
    %vm72 = vcmp.eq.s32.totalorder %v66, 9
    %vm73 = vmor %vm67, %vm70
    %vm74 = vmor %vm68, %vm71
    %vm75 = vmor %vm69, %vm72
    %v76 = vpack.c.bf16 %v61, %v60
    %v77 = vpack.c.bf16 %v62, %v62
    %v78 = vld [vmem:[%s1] sm:$0xf]
    %v79 = vld [vmem:[%s1 + $0x4] sm:$0xf]
    %v80 = vld [vmem:[%s1 + $0x8] sm:$0xf]
    %v81 = vld [vmem:[%s1 + $0xc] sm:$0xf]
    %v82 = vld [vmem:[%s2] sm:$0x1]
    %v84 = vlaneseq
    %v85 = vshrl.u32 %v84, 7
    %v86 = vsub.s32 0, %v85
    %v87 = vrot.slane %v82, %v86
    %v93 = vunpack.c.l.b16 %v78
    %v94 = vunpack.c.l.b16 %v79
    %v95 = vunpack.c.l.b16 %v80
    %v96 = vunpack.c.l.b16 %v81
    %v97 = vpack.c.b16 %v94, %v93
    %v98 = vpack.c.b16 %v96, %v95
    %vm101 = vcmask 261120
    %v103 = vsel %vm101, %v76, 0
    %v106 = vsel %vm101, %v77, 0
    %108 = vmatprep.subr.bf16.mxu0 0
    %109 = vmatpush1.bf16.msra.mxu0 0
    %110 = vmatprep.subr.bf16.mxu0 0
    %111 = vmatpush1.bf16.msra.mxu0 0
    %112 = vmatprep.subr.bf16.mxu0 0
    %113 = vmatpush1.bf16.msra.mxu0 0
    %114 = vmatprep.subr.bf16.mxu0 0
    %115 = vmatpush1.bf16.msra.mxu0 0
    %116 = vmatprep.subr.bf16.mxu0 0
    %117 = vmatpush1.bf16.msra.mxu0 0
    %118 = vmatprep.subr.bf16.mxu0 0
    %119 = vmatpush1.bf16.msra.mxu0 0
    %120 = vmatprep.subr.bf16.mxu0 0
    %121 = vmatpush1.bf16.msra.mxu0 %v98
    %122 = vmatprep.subr.bf16.mxu0 0
    %123 = vmatpush1.bf16.msra.mxu0 %v97
    %124 = vmatprep.subr.bf16.mxu0 0
    %125 = vmatpush2.bf16.msra.mxu0 0
    %126 = vmatprep.subr.bf16.mxu0 0
    %127 = vmatpush2.bf16.msra.mxu0 0
    %128 = vmatprep.subr.bf16.mxu0 0
    %129 = vmatpush2.bf16.msra.mxu0 0
    %130 = vmatprep.subr.bf16.mxu0 0
    %131 = vmatpush2.bf16.msra.mxu0 0
    %132 = vmatprep.subr.bf16.mxu0 0
    %133 = vmatpush2.bf16.msra.mxu0 0
    %134 = vmatprep.subr.bf16.mxu0 0
    %135 = vmatpush2.bf16.msra.mxu0 0
    %136 = vmatprep.subr.bf16.mxu0 0
    %137 = vmatpush2.bf16.msra.mxu0 0
    %138 = vmatprep.subr.bf16.mxu0 0
    %139 = vmatpush2.bf16.msra.mxu0 0
    %140 = vmatprep.mubr.bf16.mxu0 0
    %141 = vmatmul.mubr.bf16.gmra.mxu0 %v103
    %v142 = vpop.f32.mrf.mxu0
    %v143 = vadd.f32 %v87, %v142
    %v144 = vpop.f32.mrf.mxu0
    %v145 = vpop.f32.mrf.mxu0
    %v146 = vadd.f32 %v87, %v145
    %v147 = vpop.f32.mrf.mxu0
    %148 = vmatprep.mubr.bf16.mxu0 0
    %149 = vmatmul.mubr.bf16.gmra.mxu0 %v106
    %v150 = vpop.f32.mrf.mxu0
    %v151 = vadd.f32 %v87, %v150
    %v152 = vpop.f32.mrf.mxu0
    %v153 = vpop.f32.mrf.mxu0
    %v154 = vpop.f32.mrf.mxu0
    %155 = vdwg.mxu0
    %v156 = vmax.f32 %v143, 0.0
    %v157 = vmax.f32 %v146, 0.0
    %v158 = vmax.f32 %v151, 0.0
    %v159 = vpack.c.bf16 %v157, %v156
    %v160 = vpack.c.bf16 %v158, %v158
    %v161 = vld [vmem:[%s3] sm:$0x1]
    %v162 = vld [vmem:[#allocation2] sm:$0x1]
    %v164 = vlaneseq
    %v165 = vshrl.u32 %v164, 7
    %v166 = vsub.s32 0, %v165
    %v167 = vrot.slane %v162, %v166
    %vm169 = vcmask 15360
    %v171 = vsel %vm169, %v159, 0
    %v174 = vsel %vm169, %v160, 0
    %vm176 = vcmask 1040384
    %v178 = vsel %vm176, %v161, 0
    %180 = vmatprep.subr.bf16.mxu0 0
    %181 = vmatpush1.bf16.msra.mxu0 0
    %182 = vmatprep.subr.bf16.mxu0 0
    %183 = vmatpush1.bf16.msra.mxu0 0
    %184 = vmatprep.subr.bf16.mxu0 0
    %185 = vmatpush1.bf16.msra.mxu0 0
    %186 = vmatprep.subr.bf16.mxu0 0
    %187 = vmatpush1.bf16.msra.mxu0 0
    %188 = vmatprep.subr.bf16.mxu0 0
    %189 = vmatpush1.bf16.msra.mxu0 0
    %190 = vmatprep.subr.bf16.mxu0 0
    %191 = vmatpush1.bf16.msra.mxu0 0
    %192 = vmatprep.subr.bf16.mxu0 0
    %193 = vmatpush1.bf16.msra.mxu0 0
    %194 = vmatprep.subr.bf16.mxu0 0
    %195 = vmatpush1.bf16.msra.mxu0 %v178
    %196 = vmatprep.subr.bf16.mxu0 0
    %197 = vmatpush2.bf16.msra.mxu0 0
    %198 = vmatprep.subr.bf16.mxu0 0
    %199 = vmatpush2.bf16.msra.mxu0 0
    %200 = vmatprep.subr.bf16.mxu0 0
    %201 = vmatpush2.bf16.msra.mxu0 0
    %202 = vmatprep.subr.bf16.mxu0 0
    %203 = vmatpush2.bf16.msra.mxu0 0
    %204 = vmatprep.subr.bf16.mxu0 0
    %205 = vmatpush2.bf16.msra.mxu0 0
    %206 = vmatprep.subr.bf16.mxu0 0
    %207 = vmatpush2.bf16.msra.mxu0 0
    %208 = vmatprep.subr.bf16.mxu0 0
    %209 = vmatpush2.bf16.msra.mxu0 0
    %210 = vmatprep.subr.bf16.mxu0 0
    %211 = vmatpush2.bf16.msra.mxu0 0
    %212 = vmatprep.mubr.bf16.mxu0 0
    %213 = vmatmul.mubr.bf16.gmra.mxu0 %v171
    %v214 = vpop.f32.mrf.mxu0
    %v215 = vadd.f32 %v167, %v214
    %v216 = vpop.f32.mrf.mxu0
    %v217 = vpop.f32.mrf.mxu0
    %v218 = vadd.f32 %v167, %v217
    %v219 = vpop.f32.mrf.mxu0
    %220 = vmatprep.mubr.bf16.mxu0 0
    %221 = vmatmul.mubr.bf16.gmra.mxu0 %v174
    %v222 = vpop.f32.mrf.mxu0
    %v223 = vadd.f32 %v167, %v222
    %v224 = vpop.f32.mrf.mxu0
    %v225 = vpop.f32.mrf.mxu0
    %v226 = vpop.f32.mrf.mxu0
    %227 = vdwg.mxu0
    %v228 = vxor.u32 %v215, 2147483648
    %v229 = vxor.u32 %v218, 2147483648
    %v230 = vxor.u32 %v223, 2147483648
    %v231 = vmul.f32 %v228, 1.442695
    %v232 = vpow.pop %v231
    %v233 = vmul.f32 %v229, 1.442695
    %v234 = vpow.pop %v233
    %v235 = vmul.f32 %v230, 1.442695
    %v236 = vpow.pop %v235
    %v237 = vadd.f32 %v232, 1.0
    %v238 = vadd.f32 %v234, 1.0
    %v239 = vadd.f32 %v236, 1.0
    %v240 = vrcp.pop %v237
    %v241 = vmul.f32 1.0, %v240
    %v242 = vrcp.pop %v238
    %v243 = vmul.f32 1.0, %v242
    %v244 = vrcp.pop %v239
    %v245 = vmul.f32 1.0, %v244
    %v246 = vsel %vm73, 1.0, %v241
    %v247 = vsel %vm74, 1.0, %v243
    %v248 = vsel %vm75, 1.0, %v245
    %250 = vset.pattern.permute.xlu0 0
    %251 = vperm.xlu0 %250, %v246
    %v252 = vpop.permute.xlu0 %251
    %255 = vset.pattern.permute.xlu0 0
    %256 = vperm.xlu0 %255, %v247
    %v257 = vpop.permute.xlu0 %256
    %260 = vset.pattern.permute.xlu0 0
    %261 = vperm.xlu0 %260, %v248
    %v262 = vpop.permute.xlu0 %261
    %v264 = vmul.f32 %v60, %v252
    %v265 = vmul.f32 %v61, %v257
    %v266 = vmul.f32 %v62, %v262
    %v267 = vld [vmem:[%s5] sm:$0x1]
    %v268 = vld [vmem:[%s6] sm:$0x1]
    %v269 = vsel %vm101, %v264, 0.0
    %270 = vadd.xlane.f32.xlu0 %v269
    %v271 = vpop.xlane.xlu0 %270
    %v272 = vsel %vm101, %v265, 0.0
    %273 = vadd.xlane.f32.xlu0 %v272
    %v274 = vpop.xlane.xlu0 %273
    %vm275 = vcmask 254976
    %v276 = vsel %vm275, %v266, 0.0
    %277 = vadd.xlane.f32.xlu0 %v276
    %v278 = vpop.xlane.xlu0 %277
    %v279 = vrcp.pop 32.0
    %v280 = vmul.f32 %v271, %v279
    %v281 = vmul.f32 %v274, %v279
    %v282 = vmul.f32 %v278, %v279
    %v283 = vsub.f32 %v264, %v280
    %v284 = vsub.f32 %v265, %v281
    %v285 = vsub.f32 %v266, %v282
    %v286 = vmul.f32 %v283, %v283
    %v287 = vmul.f32 %v284, %v284
    %v288 = vmul.f32 %v285, %v285
    %v289 = vsel %vm101, %v286, 0.0
    %290 = vadd.xlane.f32.xlu0 %v289
    %v291 = vpop.xlane.xlu0 %290
    %v292 = vsel %vm101, %v287, 0.0
    %293 = vadd.xlane.f32.xlu0 %v292
    %v294 = vpop.xlane.xlu0 %293
    %v295 = vsel %vm275, %v288, 0.0
    %296 = vadd.xlane.f32.xlu0 %v295
    %v297 = vpop.xlane.xlu0 %296
    %v298 = vmul.f32 %v291, %v279
    %v299 = vmul.f32 %v294, %v279
    %v300 = vmul.f32 %v297, %v279
    %v301 = vadd.f32 %v298, 1e-05
    %v302 = vadd.f32 %v299, 1e-05
    %v303 = vadd.f32 %v300, 1e-05
    %v304 = vrsqrt.pop %v301
    %v305 = vrsqrt.pop %v302
    %v306 = vrsqrt.pop %v303
    %v307 = vmul.f32 %v283, %v304
    %v308 = vmul.f32 %v284, %v305
    %v309 = vmul.f32 %v285, %v306
    %v311 = vlaneseq
    %v312 = vshrl.u32 %v311, 7
    %v313 = vsub.s32 0, %v312
    %v314 = vrot.slane %v267, %v313
    %v316 = vmul.f32 %v307, %v314
    %v317 = vmul.f32 %v308, %v314
    %v318 = vmul.f32 %v309, %v314
    %v320 = vlaneseq
    %v321 = vshrl.u32 %v320, 7
    %v322 = vsub.s32 0, %v321
    %v323 = vrot.slane %v268, %v322
    %v325 = vadd.f32 %v316, %v323
    %v326 = vadd.f32 %v317, %v323
    %v327 = vadd.f32 %v318, %v323
    %v328 = vpack.c.bf16 %v326, %v325
    %v329 = vpack.c.bf16 %v327, %v327
    %v330 = vld [vmem:[%s7] sm:$0xf]
    %v331 = vld [vmem:[%s7 + $0x4] sm:$0xf]
    %v332 = vld [vmem:[%s7 + $0x8] sm:$0xf]
    %v333 = vld [vmem:[%s7 + $0xc] sm:$0xf]
    %v334 = vld [vmem:[%s8] sm:$0x1]
    %v336 = vlaneseq
    %v337 = vshrl.u32 %v336, 7
    %v338 = vsub.s32 0, %v337
    %v339 = vrot.slane %v334, %v338
    %v345 = vunpack.c.l.b16 %v330
    %v346 = vunpack.c.l.b16 %v331
    %v347 = vunpack.c.l.b16 %v332
    %v348 = vunpack.c.l.b16 %v333
    %v349 = vpack.c.b16 %v346, %v345
    %v350 = vpack.c.b16 %v348, %v347
    %v354 = vsel %vm101, %v328, 0
    %v357 = vsel %vm101, %v329, 0
    %359 = vmatprep.subr.bf16.mxu0 0
    %360 = vmatpush1.bf16.msra.mxu0 0
    %361 = vmatprep.subr.bf16.mxu0 0
    %362 = vmatpush1.bf16.msra.mxu0 0
    %363 = vmatprep.subr.bf16.mxu0 0
    %364 = vmatpush1.bf16.msra.mxu0 0
    %365 = vmatprep.subr.bf16.mxu0 0
    %366 = vmatpush1.bf16.msra.mxu0 0
    %367 = vmatprep.subr.bf16.mxu0 0
    %368 = vmatpush1.bf16.msra.mxu0 0
    %369 = vmatprep.subr.bf16.mxu0 0
    %370 = vmatpush1.bf16.msra.mxu0 0
    %371 = vmatprep.subr.bf16.mxu0 0
    %372 = vmatpush1.bf16.msra.mxu0 %v350
    %373 = vmatprep.subr.bf16.mxu0 0
    %374 = vmatpush1.bf16.msra.mxu0 %v349
    %375 = vmatprep.subr.bf16.mxu0 0
    %376 = vmatpush2.bf16.msra.mxu0 0
    %377 = vmatprep.subr.bf16.mxu0 0
    %378 = vmatpush2.bf16.msra.mxu0 0
    %379 = vmatprep.subr.bf16.mxu0 0
    %380 = vmatpush2.bf16.msra.mxu0 0
    %381 = vmatprep.subr.bf16.mxu0 0
    %382 = vmatpush2.bf16.msra.mxu0 0
    %383 = vmatprep.subr.bf16.mxu0 0
    %384 = vmatpush2.bf16.msra.mxu0 0
    %385 = vmatprep.subr.bf16.mxu0 0
    %386 = vmatpush2.bf16.msra.mxu0 0
    %387 = vmatprep.subr.bf16.mxu0 0
    %388 = vmatpush2.bf16.msra.mxu0 0
    %389 = vmatprep.subr.bf16.mxu0 0
    %390 = vmatpush2.bf16.msra.mxu0 0
    %391 = vmatprep.mubr.bf16.mxu0 0
    %392 = vmatmul.mubr.bf16.gmra.mxu0 %v354
    %v393 = vpop.f32.mrf.mxu0
    %v394 = vadd.f32 %v339, %v393
    %v395 = vpop.f32.mrf.mxu0
    %v396 = vpop.f32.mrf.mxu0
    %v397 = vadd.f32 %v339, %v396
    %v398 = vpop.f32.mrf.mxu0
    %399 = vmatprep.mubr.bf16.mxu0 0
    %400 = vmatmul.mubr.bf16.gmra.mxu0 %v357
    %v401 = vpop.f32.mrf.mxu0
    %v402 = vadd.f32 %v339, %v401
    %v403 = vpop.f32.mrf.mxu0
    %v404 = vpop.f32.mrf.mxu0
    %v405 = vpop.f32.mrf.mxu0
    %406 = vdwg.mxu0
    %v407 = vmul.f32 %v394, 0.35355338
    %v408 = vmul.f32 %v397, 0.35355338
    %v409 = vmul.f32 %v402, 0.35355338
    %v410 = vpack.c.bf16 %v408, %v407
    %v411 = vpack.c.bf16 %v409, %v409
    %v412 = vpack.c.bf16 %v397, %v394
    %v413 = vpack.c.bf16 %v402, %v402
    %415 = vrot.lane.b32.xlu0 %v412, 96
    %v416 = vpop.permute.xlu0 %415
    %vm417 = vcmask 64512
    %v419 = vsel %vm417, %v410, 0
    %v422 = vsel %vm417, %v416, 0
    %424 = vmatprep.subr.bf16.mxu0 0
    %425 = vmatpush1.bf16.xpose.msra.mxu0 0
    %426 = vmatprep.subr.bf16.mxu0 0
    %427 = vmatpush1.bf16.xpose.msra.mxu0 0
    %428 = vmatprep.subr.bf16.mxu0 0
    %429 = vmatpush1.bf16.xpose.msra.mxu0 0
    %430 = vmatprep.subr.bf16.mxu0 0
    %431 = vmatpush1.bf16.xpose.msra.mxu0 0
    %432 = vmatprep.subr.bf16.mxu0 0
    %433 = vmatpush1.bf16.xpose.msra.mxu0 0
    %434 = vmatprep.subr.bf16.mxu0 0
    %435 = vmatpush1.bf16.xpose.msra.mxu0 0
    %436 = vmatprep.subr.bf16.mxu0 0
    %437 = vmatpush1.bf16.xpose.msra.mxu0 0
    %438 = vmatprep.subr.bf16.mxu0 0
    %439 = vmatpush1.bf16.xpose.msra.mxu0 %v422
    %440 = vmatprep.subr.bf16.mxu0 0
    %441 = vmatpush2.bf16.xpose.msra.mxu0 0
    %442 = vmatprep.subr.bf16.mxu0 0
    %443 = vmatpush2.bf16.xpose.msra.mxu0 0
    %444 = vmatprep.subr.bf16.mxu0 0
    %445 = vmatpush2.bf16.xpose.msra.mxu0 0
    %446 = vmatprep.subr.bf16.mxu0 0
    %447 = vmatpush2.bf16.xpose.msra.mxu0 0
    %448 = vmatprep.subr.bf16.mxu0 0
    %449 = vmatpush2.bf16.xpose.msra.mxu0 0
    %450 = vmatprep.subr.bf16.mxu0 0
    %451 = vmatpush2.bf16.xpose.msra.mxu0 0
    %452 = vmatprep.subr.bf16.mxu0 0
    %453 = vmatpush2.bf16.xpose.msra.mxu0 0
    %454 = vmatprep.subr.bf16.mxu0 0
    %455 = vmatpush2.bf16.xpose.msra.mxu0 0
    %456 = vmatprep.mubr.bf16.mxu0 0
    %457 = vmatmul.mubr.bf16.gmra.mxu0 %v419
    %v458 = vpop.f32.mrf.mxu0
    %v459 = vadd.f32 0.0, %v458
    %v460 = vpop.f32.mrf.mxu0
    %v461 = vpop.f32.mrf.mxu0
    %v462 = vadd.f32 0.0, %v461
    %v463 = vpop.f32.mrf.mxu0
    %464 = vdwg.mxu0
    %vm465 = vcmask 72704
    %v466 = vsel %vm465, %v459, -inf
    %467 = vmax.xlane.f32.xlu0 %v466
    %v468 = vpop.xlane.xlu0 %467
    %vm469 = vcmask 65536
    %v470 = vsel %vm469, %v462, -inf
    %471 = vmax.xlane.f32.xlu0 %v470
    %v472 = vpop.xlane.xlu0 %471
    %v473 = vsub.f32 %v459, %v468
    %v474 = vsub.f32 %v462, %v472
    %v475 = vmul.f32 %v473, 1.442695
    %v476 = vpow.pop %v475
    %v477 = vmul.f32 %v474, 1.442695
    %v478 = vpow.pop %v477
    %v479 = vsel %vm465, %v476, 0.0
    %480 = vadd.xlane.f32.xlu0 %v479
    %v481 = vpop.xlane.xlu0 %480
    %v482 = vsel %vm469, %v478, 0.0
    %483 = vadd.xlane.f32.xlu0 %v482
    %v484 = vpop.xlane.xlu0 %483
    %v485 = vrcp.pop %v481
    %v486 = vrcp.pop %v484
    %v487 = vmul.f32 %v476, %v485
    %v488 = vmul.f32 %v478, %v486
    %v489 = vpack.c.bf16 %v488, %v487
    %490 = vrot.lane.b32.xlu0 %v412, 64
    %v491 = vpop.permute.xlu0 %490
    %v493 = vsel %vm465, %v489, 0
    %vm495 = vcmask 1043456
    %vm496 = vcmask 1044480
    %v497 = vsel %vm495, 4294967295, 65535
    %v498 = vsel %vm496, %v497, 0
    %v500 = vand.u32 %v491, %v498
    %502 = vmatprep.subr.bf16.mxu0 0
    %503 = vmatpush1.bf16.msra.mxu0 0
    %504 = vmatprep.subr.bf16.mxu0 0
    %505 = vmatpush1.bf16.msra.mxu0 0
    %506 = vmatprep.subr.bf16.mxu0 0
    %507 = vmatpush1.bf16.msra.mxu0 0
    %508 = vmatprep.subr.bf16.mxu0 0
    %509 = vmatpush1.bf16.msra.mxu0 0
    %510 = vmatprep.subr.bf16.mxu0 0
    %511 = vmatpush1.bf16.msra.mxu0 0
    %512 = vmatprep.subr.bf16.mxu0 0
    %513 = vmatpush1.bf16.msra.mxu0 0
    %514 = vmatprep.subr.bf16.mxu0 0
    %515 = vmatpush1.bf16.msra.mxu0 0
    %516 = vmatprep.subr.bf16.mxu0 0
    %517 = vmatpush1.bf16.msra.mxu0 %v500
    %518 = vmatprep.subr.bf16.mxu0 0
    %519 = vmatpush2.bf16.msra.mxu0 0
    %520 = vmatprep.subr.bf16.mxu0 0
    %521 = vmatpush2.bf16.msra.mxu0 0
    %522 = vmatprep.subr.bf16.mxu0 0
    %523 = vmatpush2.bf16.msra.mxu0 0
    %524 = vmatprep.subr.bf16.mxu0 0
    %525 = vmatpush2.bf16.msra.mxu0 0
    %526 = vmatprep.subr.bf16.mxu0 0
    %527 = vmatpush2.bf16.msra.mxu0 0
    %528 = vmatprep.subr.bf16.mxu0 0
    %529 = vmatpush2.bf16.msra.mxu0 0
    %530 = vmatprep.subr.bf16.mxu0 0
    %531 = vmatpush2.bf16.msra.mxu0 0
    %532 = vmatprep.subr.bf16.mxu0 0
    %533 = vmatpush2.bf16.msra.mxu0 0
    %534 = vmatprep.mubr.bf16.mxu0 0
    %535 = vmatmul.mubr.bf16.gmra.mxu0 %v493
    %v536 = vpop.f32.mrf.mxu0
    %v537 = vadd.f32 0.0, %v536
    %v538 = vpop.f32.mrf.mxu0
    %v539 = vpop.f32.mrf.mxu0
    %v540 = vadd.f32 0.0, %v539
    %v541 = vpop.f32.mrf.mxu0
    %542 = vdwg.mxu0
    %544 = vrot.lane.b32.xlu0 %v410, 120
    %v545 = vpop.permute.xlu0 %544
    %546 = vrot.lane.b32.xlu0 %v412, 88
    %v547 = vpop.permute.xlu0 %546
    %v549 = vsel %vm417, %v545, 0
    %v552 = vsel %vm417, %v547, 0
    %554 = vmatprep.subr.bf16.mxu0 0
    %555 = vmatpush1.bf16.xpose.msra.mxu0 0
    %556 = vmatprep.subr.bf16.mxu0 0
    %557 = vmatpush1.bf16.xpose.msra.mxu0 0
    %558 = vmatprep.subr.bf16.mxu0 0
    %559 = vmatpush1.bf16.xpose.msra.mxu0 0
    %560 = vmatprep.subr.bf16.mxu0 0
    %561 = vmatpush1.bf16.xpose.msra.mxu0 0
    %562 = vmatprep.subr.bf16.mxu0 0
    %563 = vmatpush1.bf16.xpose.msra.mxu0 0
    %564 = vmatprep.subr.bf16.mxu0 0
    %565 = vmatpush1.bf16.xpose.msra.mxu0 0
    %566 = vmatprep.subr.bf16.mxu0 0
    %567 = vmatpush1.bf16.xpose.msra.mxu0 0
    %568 = vmatprep.subr.bf16.mxu0 0
    %569 = vmatpush1.bf16.xpose.msra.mxu0 %v552
    %570 = vmatprep.subr.bf16.mxu0 0
    %571 = vmatpush2.bf16.xpose.msra.mxu0 0
    %572 = vmatprep.subr.bf16.mxu0 0
    %573 = vmatpush2.bf16.xpose.msra.mxu0 0
    %574 = vmatprep.subr.bf16.mxu0 0
    %575 = vmatpush2.bf16.xpose.msra.mxu0 0
    %576 = vmatprep.subr.bf16.mxu0 0
    %577 = vmatpush2.bf16.xpose.msra.mxu0 0
    %578 = vmatprep.subr.bf16.mxu0 0
    %579 = vmatpush2.bf16.xpose.msra.mxu0 0
    %580 = vmatprep.subr.bf16.mxu0 0
    %581 = vmatpush2.bf16.xpose.msra.mxu0 0
    %582 = vmatprep.subr.bf16.mxu0 0
    %583 = vmatpush2.bf16.xpose.msra.mxu0 0
    %584 = vmatprep.subr.bf16.mxu0 0
    %585 = vmatpush2.bf16.xpose.msra.mxu0 0
    %586 = vmatprep.mubr.bf16.mxu0 0
    %587 = vmatmul.mubr.bf16.gmra.mxu0 %v549
    %v588 = vpop.f32.mrf.mxu0
    %v589 = vadd.f32 0.0, %v588
    %v590 = vpop.f32.mrf.mxu0
    %v591 = vpop.f32.mrf.mxu0
    %v592 = vadd.f32 0.0, %v591
    %v593 = vpop.f32.mrf.mxu0
    %594 = vdwg.mxu0
    %v595 = vsel %vm465, %v589, -inf
    %596 = vmax.xlane.f32.xlu0 %v595
    %v597 = vpop.xlane.xlu0 %596
    %v598 = vsel %vm469, %v592, -inf
    %599 = vmax.xlane.f32.xlu0 %v598
    %v600 = vpop.xlane.xlu0 %599
    %v601 = vsub.f32 %v589, %v597
    %v602 = vsub.f32 %v592, %v600
    %v603 = vmul.f32 %v601, 1.442695
    %v604 = vpow.pop %v603
    %v605 = vmul.f32 %v602, 1.442695
    %v606 = vpow.pop %v605
    %v607 = vsel %vm465, %v604, 0.0
    %608 = vadd.xlane.f32.xlu0 %v607
    %v609 = vpop.xlane.xlu0 %608
    %v610 = vsel %vm469, %v606, 0.0
    %611 = vadd.xlane.f32.xlu0 %v610
    %v612 = vpop.xlane.xlu0 %611
    %v613 = vrcp.pop %v609
    %v614 = vrcp.pop %v612
    %v615 = vmul.f32 %v604, %v613
    %v616 = vmul.f32 %v606, %v614
    %v617 = vpack.c.bf16 %v616, %v615
    %618 = vrot.lane.b32.xlu0 %v412, 56
    %v619 = vpop.permute.xlu0 %618
    %v621 = vsel %vm465, %v617, 0
    %v624 = vand.u32 %v619, %v498
    %626 = vmatprep.subr.bf16.mxu0 0
    %627 = vmatpush1.bf16.msra.mxu0 0
    %628 = vmatprep.subr.bf16.mxu0 0
    %629 = vmatpush1.bf16.msra.mxu0 0
    %630 = vmatprep.subr.bf16.mxu0 0
    %631 = vmatpush1.bf16.msra.mxu0 0
    %632 = vmatprep.subr.bf16.mxu0 0
    %633 = vmatpush1.bf16.msra.mxu0 0
    %634 = vmatprep.subr.bf16.mxu0 0
    %635 = vmatpush1.bf16.msra.mxu0 0
    %636 = vmatprep.subr.bf16.mxu0 0
    %637 = vmatpush1.bf16.msra.mxu0 0
    %638 = vmatprep.subr.bf16.mxu0 0
    %639 = vmatpush1.bf16.msra.mxu0 0
    %640 = vmatprep.subr.bf16.mxu0 0
    %641 = vmatpush1.bf16.msra.mxu0 %v624
    %642 = vmatprep.subr.bf16.mxu0 0
    %643 = vmatpush2.bf16.msra.mxu0 0
    %644 = vmatprep.subr.bf16.mxu0 0
    %645 = vmatpush2.bf16.msra.mxu0 0
    %646 = vmatprep.subr.bf16.mxu0 0
    %647 = vmatpush2.bf16.msra.mxu0 0
    %648 = vmatprep.subr.bf16.mxu0 0
    %649 = vmatpush2.bf16.msra.mxu0 0
    %650 = vmatprep.subr.bf16.mxu0 0
    %651 = vmatpush2.bf16.msra.mxu0 0
    %652 = vmatprep.subr.bf16.mxu0 0
    %653 = vmatpush2.bf16.msra.mxu0 0
    %654 = vmatprep.subr.bf16.mxu0 0
    %655 = vmatpush2.bf16.msra.mxu0 0
    %656 = vmatprep.subr.bf16.mxu0 0
    %657 = vmatpush2.bf16.msra.mxu0 0
    %658 = vmatprep.mubr.bf16.mxu0 0
    %659 = vmatmul.mubr.bf16.gmra.mxu0 %v621
    %v660 = vpop.f32.mrf.mxu0
    %v661 = vadd.f32 0.0, %v660
    %v662 = vpop.f32.mrf.mxu0
    %v663 = vpop.f32.mrf.mxu0
    %v664 = vadd.f32 0.0, %v663
    %v665 = vpop.f32.mrf.mxu0
    %666 = vdwg.mxu0
    %667 = vrot.lane.b32.xlu0 %v410, 112
    %v668 = vpop.permute.xlu0 %667
    %669 = vrot.lane.b32.xlu0 %v412, 80
    %v670 = vpop.permute.xlu0 %669
    %v672 = vsel %vm417, %v668, 0
    %v675 = vsel %vm417, %v670, 0
    %677 = vmatprep.subr.bf16.mxu0 0
    %678 = vmatpush1.bf16.xpose.msra.mxu0 0
    %679 = vmatprep.subr.bf16.mxu0 0
    %680 = vmatpush1.bf16.xpose.msra.mxu0 0
    %681 = vmatprep.subr.bf16.mxu0 0
    %682 = vmatpush1.bf16.xpose.msra.mxu0 0
    %683 = vmatprep.subr.bf16.mxu0 0
    %684 = vmatpush1.bf16.xpose.msra.mxu0 0
    %685 = vmatprep.subr.bf16.mxu0 0
    %686 = vmatpush1.bf16.xpose.msra.mxu0 0
    %687 = vmatprep.subr.bf16.mxu0 0
    %688 = vmatpush1.bf16.xpose.msra.mxu0 0
    %689 = vmatprep.subr.bf16.mxu0 0
    %690 = vmatpush1.bf16.xpose.msra.mxu0 0
    %691 = vmatprep.subr.bf16.mxu0 0
    %692 = vmatpush1.bf16.xpose.msra.mxu0 %v675
    %693 = vmatprep.subr.bf16.mxu0 0
    %694 = vmatpush2.bf16.xpose.msra.mxu0 0
    %695 = vmatprep.subr.bf16.mxu0 0
    %696 = vmatpush2.bf16.xpose.msra.mxu0 0
    %697 = vmatprep.subr.bf16.mxu0 0
    %698 = vmatpush2.bf16.xpose.msra.mxu0 0
    %699 = vmatprep.subr.bf16.mxu0 0
    %700 = vmatpush2.bf16.xpose.msra.mxu0 0
    %701 = vmatprep.subr.bf16.mxu0 0
    %702 = vmatpush2.bf16.xpose.msra.mxu0 0
    %703 = vmatprep.subr.bf16.mxu0 0
    %704 = vmatpush2.bf16.xpose.msra.mxu0 0
    %705 = vmatprep.subr.bf16.mxu0 0
    %706 = vmatpush2.bf16.xpose.msra.mxu0 0
    %707 = vmatprep.subr.bf16.mxu0 0
    %708 = vmatpush2.bf16.xpose.msra.mxu0 0
    %709 = vmatprep.mubr.bf16.mxu0 0
    %710 = vmatmul.mubr.bf16.gmra.mxu0 %v672
    %v711 = vpop.f32.mrf.mxu0
    %v712 = vadd.f32 0.0, %v711
    %v713 = vpop.f32.mrf.mxu0
    %v714 = vpop.f32.mrf.mxu0
    %v715 = vadd.f32 0.0, %v714
    %v716 = vpop.f32.mrf.mxu0
    %717 = vdwg.mxu0
    %v718 = vsel %vm465, %v712, -inf
    %719 = vmax.xlane.f32.xlu0 %v718
    %v720 = vpop.xlane.xlu0 %719
    %v721 = vsel %vm469, %v715, -inf
    %722 = vmax.xlane.f32.xlu0 %v721
    %v723 = vpop.xlane.xlu0 %722
    %v724 = vsub.f32 %v712, %v720
    %v725 = vsub.f32 %v715, %v723
    %v726 = vmul.f32 %v724, 1.442695
    %v727 = vpow.pop %v726
    %v728 = vmul.f32 %v725, 1.442695
    %v729 = vpow.pop %v728
    %v730 = vsel %vm465, %v727, 0.0
    %731 = vadd.xlane.f32.xlu0 %v730
    %v732 = vpop.xlane.xlu0 %731
    %v733 = vsel %vm469, %v729, 0.0
    %734 = vadd.xlane.f32.xlu0 %v733
    %v735 = vpop.xlane.xlu0 %734
    %v736 = vrcp.pop %v732
    %v737 = vrcp.pop %v735
    %v738 = vmul.f32 %v727, %v736
    %v739 = vmul.f32 %v729, %v737
    %v740 = vpack.c.bf16 %v739, %v738
    %741 = vrot.lane.b32.xlu0 %v412, 48
    %v742 = vpop.permute.xlu0 %741
    %v744 = vsel %vm465, %v740, 0
    %v747 = vand.u32 %v742, %v498
    %749 = vmatprep.subr.bf16.mxu0 0
    %750 = vmatpush1.bf16.msra.mxu0 0
    %751 = vmatprep.subr.bf16.mxu0 0
    %752 = vmatpush1.bf16.msra.mxu0 0
    %753 = vmatprep.subr.bf16.mxu0 0
    %754 = vmatpush1.bf16.msra.mxu0 0
    %755 = vmatprep.subr.bf16.mxu0 0
    %756 = vmatpush1.bf16.msra.mxu0 0
    %757 = vmatprep.subr.bf16.mxu0 0
    %758 = vmatpush1.bf16.msra.mxu0 0
    %759 = vmatprep.subr.bf16.mxu0 0
    %760 = vmatpush1.bf16.msra.mxu0 0
    %761 = vmatprep.subr.bf16.mxu0 0
    %762 = vmatpush1.bf16.msra.mxu0 0
    %763 = vmatprep.subr.bf16.mxu0 0
    %764 = vmatpush1.bf16.msra.mxu0 %v747
    %765 = vmatprep.subr.bf16.mxu0 0
    %766 = vmatpush2.bf16.msra.mxu0 0
    %767 = vmatprep.subr.bf16.mxu0 0
    %768 = vmatpush2.bf16.msra.mxu0 0
    %769 = vmatprep.subr.bf16.mxu0 0
    %770 = vmatpush2.bf16.msra.mxu0 0
    %771 = vmatprep.subr.bf16.mxu0 0
    %772 = vmatpush2.bf16.msra.mxu0 0
    %773 = vmatprep.subr.bf16.mxu0 0
    %774 = vmatpush2.bf16.msra.mxu0 0
    %775 = vmatprep.subr.bf16.mxu0 0
    %776 = vmatpush2.bf16.msra.mxu0 0
    %777 = vmatprep.subr.bf16.mxu0 0
    %778 = vmatpush2.bf16.msra.mxu0 0
    %779 = vmatprep.subr.bf16.mxu0 0
    %780 = vmatpush2.bf16.msra.mxu0 0
    %781 = vmatprep.mubr.bf16.mxu0 0
    %782 = vmatmul.mubr.bf16.gmra.mxu0 %v744
    %v783 = vpop.f32.mrf.mxu0
    %v784 = vadd.f32 0.0, %v783
    %v785 = vpop.f32.mrf.mxu0
    %v786 = vpop.f32.mrf.mxu0
    %v787 = vadd.f32 0.0, %v786
    %v788 = vpop.f32.mrf.mxu0
    %789 = vdwg.mxu0
    %790 = vrot.lane.b32.xlu0 %v410, 104
    %v791 = vpop.permute.xlu0 %790
    %792 = vrot.lane.b32.xlu0 %v412, 72
    %v793 = vpop.permute.xlu0 %792
    %v795 = vsel %vm417, %v791, 0
    %v798 = vsel %vm417, %v793, 0
    %800 = vmatprep.subr.bf16.mxu0 0
    %801 = vmatpush1.bf16.xpose.msra.mxu0 0
    %802 = vmatprep.subr.bf16.mxu0 0
    %803 = vmatpush1.bf16.xpose.msra.mxu0 0
    %804 = vmatprep.subr.bf16.mxu0 0
    %805 = vmatpush1.bf16.xpose.msra.mxu0 0
    %806 = vmatprep.subr.bf16.mxu0 0
    %807 = vmatpush1.bf16.xpose.msra.mxu0 0
    %808 = vmatprep.subr.bf16.mxu0 0
    %809 = vmatpush1.bf16.xpose.msra.mxu0 0
    %810 = vmatprep.subr.bf16.mxu0 0
    %811 = vmatpush1.bf16.xpose.msra.mxu0 0
    %812 = vmatprep.subr.bf16.mxu0 0
    %813 = vmatpush1.bf16.xpose.msra.mxu0 0
    %814 = vmatprep.subr.bf16.mxu0 0
    %815 = vmatpush1.bf16.xpose.msra.mxu0 %v798
    %816 = vmatprep.subr.bf16.mxu0 0
    %817 = vmatpush2.bf16.xpose.msra.mxu0 0
    %818 = vmatprep.subr.bf16.mxu0 0
    %819 = vmatpush2.bf16.xpose.msra.mxu0 0
    %820 = vmatprep.subr.bf16.mxu0 0
    %821 = vmatpush2.bf16.xpose.msra.mxu0 0
    %822 = vmatprep.subr.bf16.mxu0 0
    %823 = vmatpush2.bf16.xpose.msra.mxu0 0
    %824 = vmatprep.subr.bf16.mxu0 0
    %825 = vmatpush2.bf16.xpose.msra.mxu0 0
    %826 = vmatprep.subr.bf16.mxu0 0
    %827 = vmatpush2.bf16.xpose.msra.mxu0 0
    %828 = vmatprep.subr.bf16.mxu0 0
    %829 = vmatpush2.bf16.xpose.msra.mxu0 0
    %830 = vmatprep.subr.bf16.mxu0 0
    %831 = vmatpush2.bf16.xpose.msra.mxu0 0
    %832 = vmatprep.mubr.bf16.mxu0 0
    %833 = vmatmul.mubr.bf16.gmra.mxu0 %v795
    %v834 = vpop.f32.mrf.mxu0
    %v835 = vadd.f32 0.0, %v834
    %v836 = vpop.f32.mrf.mxu0
    %v837 = vpop.f32.mrf.mxu0
    %v838 = vadd.f32 0.0, %v837
    %v839 = vpop.f32.mrf.mxu0
    %840 = vdwg.mxu0
    %v841 = vsel %vm465, %v835, -inf
    %842 = vmax.xlane.f32.xlu0 %v841
    %v843 = vpop.xlane.xlu0 %842
    %v844 = vsel %vm469, %v838, -inf
    %845 = vmax.xlane.f32.xlu0 %v844
    %v846 = vpop.xlane.xlu0 %845
    %v847 = vsub.f32 %v835, %v843
    %v848 = vsub.f32 %v838, %v846
    %v849 = vmul.f32 %v847, 1.442695
    %v850 = vpow.pop %v849
    %v851 = vmul.f32 %v848, 1.442695
    %v852 = vpow.pop %v851
    %v853 = vsel %vm465, %v850, 0.0
    %854 = vadd.xlane.f32.xlu0 %v853
    %v855 = vpop.xlane.xlu0 %854
    %v856 = vsel %vm469, %v852, 0.0
    %857 = vadd.xlane.f32.xlu0 %v856
    %v858 = vpop.xlane.xlu0 %857
    %v859 = vrcp.pop %v855
    %v860 = vrcp.pop %v858
    %v861 = vmul.f32 %v850, %v859
    %v862 = vmul.f32 %v852, %v860
    %v863 = vpack.c.bf16 %v862, %v861
    %864 = vrot.lane.b32.xlu0 %v412, 40
    %v865 = vpop.permute.xlu0 %864
    %v867 = vsel %vm465, %v863, 0
    %v870 = vand.u32 %v865, %v498
    %872 = vmatprep.subr.bf16.mxu0 0
    %873 = vmatpush1.bf16.msra.mxu0 0
    %874 = vmatprep.subr.bf16.mxu0 0
    %875 = vmatpush1.bf16.msra.mxu0 0
    %876 = vmatprep.subr.bf16.mxu0 0
    %877 = vmatpush1.bf16.msra.mxu0 0
    %878 = vmatprep.subr.bf16.mxu0 0
    %879 = vmatpush1.bf16.msra.mxu0 0
    %880 = vmatprep.subr.bf16.mxu0 0
    %881 = vmatpush1.bf16.msra.mxu0 0
    %882 = vmatprep.subr.bf16.mxu0 0
    %883 = vmatpush1.bf16.msra.mxu0 0
    %884 = vmatprep.subr.bf16.mxu0 0
    %885 = vmatpush1.bf16.msra.mxu0 0
    %886 = vmatprep.subr.bf16.mxu0 0
    %887 = vmatpush1.bf16.msra.mxu0 %v870
    %888 = vmatprep.subr.bf16.mxu0 0
    %889 = vmatpush2.bf16.msra.mxu0 0
    %890 = vmatprep.subr.bf16.mxu0 0
    %891 = vmatpush2.bf16.msra.mxu0 0
    %892 = vmatprep.subr.bf16.mxu0 0
    %893 = vmatpush2.bf16.msra.mxu0 0
    %894 = vmatprep.subr.bf16.mxu0 0
    %895 = vmatpush2.bf16.msra.mxu0 0
    %896 = vmatprep.subr.bf16.mxu0 0
    %897 = vmatpush2.bf16.msra.mxu0 0
    %898 = vmatprep.subr.bf16.mxu0 0
    %899 = vmatpush2.bf16.msra.mxu0 0
    %900 = vmatprep.subr.bf16.mxu0 0
    %901 = vmatpush2.bf16.msra.mxu0 0
    %902 = vmatprep.subr.bf16.mxu0 0
    %903 = vmatpush2.bf16.msra.mxu0 0
    %904 = vmatprep.mubr.bf16.mxu0 0
    %905 = vmatmul.mubr.bf16.gmra.mxu0 %v867
    %v906 = vpop.f32.mrf.mxu0
    %v907 = vadd.f32 0.0, %v906
    %v908 = vpop.f32.mrf.mxu0
    %v909 = vpop.f32.mrf.mxu0
    %v910 = vadd.f32 0.0, %v909
    %v911 = vpop.f32.mrf.mxu0
    %912 = vdwg.mxu0
    %915 = vrot.lane.b32.xlu0 %v661, 8
    %v916 = vpop.permute.xlu0 %915
    %917 = vrot.lane.b32.xlu0 %v664, 8
    %v918 = vpop.permute.xlu0 %917
    %923 = vrot.lane.b32.xlu0 %v784, 16
    %v924 = vpop.permute.xlu0 %923
    %925 = vrot.lane.b32.xlu0 %v787, 16
    %v926 = vpop.permute.xlu0 %925
    %931 = vrot.lane.b32.xlu0 %v907, 24
    %v932 = vpop.permute.xlu0 %931
    %933 = vrot.lane.b32.xlu0 %v910, 24
    %v934 = vpop.permute.xlu0 %933
    %v937 = vsel %vm417, %v537, %v916
    %v938 = vsel %vm417, %v540, %v918
    %vm939 = vcmask 130048
    %v940 = vsel %vm939, %v937, %v924
    %v941 = vsel %vm939, %v938, %v926
    %vm942 = vcmask 195584
    %v943 = vsel %vm942, %v940, %v932
    %v944 = vsel %vm942, %v941, %v934
    %vm945 = vsmask.f32 3328
    %v946 = vshrl.u32 %v410, 16
    %v948 = vrot.slane %v946, 4
    %v949 = vshll.u32 %v410, 16
    %v951 = vrot.slane %v949, 5
    %v952 = vor.u32 %v948, %v951
    %v954 = vshrl.u32 %v411, 16
    %v956 = vrot.slane %v954, 4
    %v957 = vshll.u32 %v411, 16
    %v959 = vrot.slane %v957, 5
    %v960 = vor.u32 %v956, %v959
    %v961 = vsel %vm945, %v952, %v960
    %v963 = vshrl.u32 %v412, 16
    %v965 = vrot.slane %v963, 4
    %v966 = vshll.u32 %v412, 16
    %v968 = vrot.slane %v966, 5
    %v969 = vor.u32 %v965, %v968
    %v971 = vshrl.u32 %v413, 16
    %v973 = vrot.slane %v971, 4
    %v974 = vshll.u32 %v413, 16
    %v976 = vrot.slane %v974, 5
    %v977 = vor.u32 %v973, %v976
    %v978 = vsel %vm945, %v969, %v977
    %979 = vrot.lane.b32.xlu0 %v978, 96
    %v980 = vpop.permute.xlu0 %979
    %v982 = vsel %vm417, %v961, 0
    %v985 = vsel %vm417, %v980, 0
    %987 = vmatprep.subr.bf16.mxu0 0
    %988 = vmatpush1.bf16.xpose.msra.mxu0 0
    %989 = vmatprep.subr.bf16.mxu0 0
    %990 = vmatpush1.bf16.xpose.msra.mxu0 0
    %991 = vmatprep.subr.bf16.mxu0 0
    %992 = vmatpush1.bf16.xpose.msra.mxu0 0
    %993 = vmatprep.subr.bf16.mxu0 0
    %994 = vmatpush1.bf16.xpose.msra.mxu0 0
    %995 = vmatprep.subr.bf16.mxu0 0
    %996 = vmatpush1.bf16.xpose.msra.mxu0 0
    %997 = vmatprep.subr.bf16.mxu0 0
    %998 = vmatpush1.bf16.xpose.msra.mxu0 0
    %999 = vmatprep.subr.bf16.mxu0 0
    %1000 = vmatpush1.bf16.xpose.msra.mxu0 0
    %1001 = vmatprep.subr.bf16.mxu0 0
    %1002 = vmatpush1.bf16.xpose.msra.mxu0 %v985
    %1003 = vmatprep.subr.bf16.mxu0 0
    %1004 = vmatpush2.bf16.xpose.msra.mxu0 0
    %1005 = vmatprep.subr.bf16.mxu0 0
    %1006 = vmatpush2.bf16.xpose.msra.mxu0 0
    %1007 = vmatprep.subr.bf16.mxu0 0
    %1008 = vmatpush2.bf16.xpose.msra.mxu0 0
    %1009 = vmatprep.subr.bf16.mxu0 0
    %1010 = vmatpush2.bf16.xpose.msra.mxu0 0
    %1011 = vmatprep.subr.bf16.mxu0 0
    %1012 = vmatpush2.bf16.xpose.msra.mxu0 0
    %1013 = vmatprep.subr.bf16.mxu0 0
    %1014 = vmatpush2.bf16.xpose.msra.mxu0 0
    %1015 = vmatprep.subr.bf16.mxu0 0
    %1016 = vmatpush2.bf16.xpose.msra.mxu0 0
    %1017 = vmatprep.subr.bf16.mxu0 0
    %1018 = vmatpush2.bf16.xpose.msra.mxu0 0
    %1019 = vmatprep.mubr.bf16.mxu0 0
    %1020 = vmatmul.mubr.bf16.gmra.mxu0 %v982
    %v1021 = vpop.f32.mrf.mxu0
    %v1022 = vadd.f32 0.0, %v1021
    %v1023 = vpop.f32.mrf.mxu0
    %v1024 = vpop.f32.mrf.mxu0
    %v1025 = vadd.f32 0.0, %v1024
    %v1026 = vpop.f32.mrf.mxu0
    %1027 = vdwg.mxu0
    %v1028 = vsel %vm465, %v1022, -inf
    %1029 = vmax.xlane.f32.xlu0 %v1028
    %v1030 = vpop.xlane.xlu0 %1029
    %v1031 = vsel %vm469, %v1025, -inf
    %1032 = vmax.xlane.f32.xlu0 %v1031
    %v1033 = vpop.xlane.xlu0 %1032
    %v1034 = vsub.f32 %v1022, %v1030
    %v1035 = vsub.f32 %v1025, %v1033
    %v1036 = vmul.f32 %v1034, 1.442695
    %v1037 = vpow.pop %v1036
    %v1038 = vmul.f32 %v1035, 1.442695
    %v1039 = vpow.pop %v1038
    %v1040 = vsel %vm465, %v1037, 0.0
    %1041 = vadd.xlane.f32.xlu0 %v1040
    %v1042 = vpop.xlane.xlu0 %1041
    %v1043 = vsel %vm469, %v1039, 0.0
    %1044 = vadd.xlane.f32.xlu0 %v1043
    %v1045 = vpop.xlane.xlu0 %1044
    %v1046 = vrcp.pop %v1042
    %v1047 = vrcp.pop %v1045
    %v1048 = vmul.f32 %v1037, %v1046
    %v1049 = vmul.f32 %v1039, %v1047
    %v1050 = vpack.c.bf16 %v1049, %v1048
    %1051 = vrot.lane.b32.xlu0 %v978, 64
    %v1052 = vpop.permute.xlu0 %1051
    %v1054 = vsel %vm465, %v1050, 0
    %v1057 = vand.u32 %v1052, %v498
    %1059 = vmatprep.subr.bf16.mxu0 0
    %1060 = vmatpush1.bf16.msra.mxu0 0
    %1061 = vmatprep.subr.bf16.mxu0 0
    %1062 = vmatpush1.bf16.msra.mxu0 0
    %1063 = vmatprep.subr.bf16.mxu0 0
    %1064 = vmatpush1.bf16.msra.mxu0 0
    %1065 = vmatprep.subr.bf16.mxu0 0
    %1066 = vmatpush1.bf16.msra.mxu0 0
    %1067 = vmatprep.subr.bf16.mxu0 0
    %1068 = vmatpush1.bf16.msra.mxu0 0
    %1069 = vmatprep.subr.bf16.mxu0 0
    %1070 = vmatpush1.bf16.msra.mxu0 0
    %1071 = vmatprep.subr.bf16.mxu0 0
    %1072 = vmatpush1.bf16.msra.mxu0 0
    %1073 = vmatprep.subr.bf16.mxu0 0
    %1074 = vmatpush1.bf16.msra.mxu0 %v1057
    %1075 = vmatprep.subr.bf16.mxu0 0
    %1076 = vmatpush2.bf16.msra.mxu0 0
    %1077 = vmatprep.subr.bf16.mxu0 0
    %1078 = vmatpush2.bf16.msra.mxu0 0
    %1079 = vmatprep.subr.bf16.mxu0 0
    %1080 = vmatpush2.bf16.msra.mxu0 0
    %1081 = vmatprep.subr.bf16.mxu0 0
    %1082 = vmatpush2.bf16.msra.mxu0 0
    %1083 = vmatprep.subr.bf16.mxu0 0
    %1084 = vmatpush2.bf16.msra.mxu0 0
    %1085 = vmatprep.subr.bf16.mxu0 0
    %1086 = vmatpush2.bf16.msra.mxu0 0
    %1087 = vmatprep.subr.bf16.mxu0 0
    %1088 = vmatpush2.bf16.msra.mxu0 0
    %1089 = vmatprep.subr.bf16.mxu0 0
    %1090 = vmatpush2.bf16.msra.mxu0 0
    %1091 = vmatprep.mubr.bf16.mxu0 0
    %1092 = vmatmul.mubr.bf16.gmra.mxu0 %v1054
    %v1093 = vpop.f32.mrf.mxu0
    %v1094 = vadd.f32 0.0, %v1093
    %v1095 = vpop.f32.mrf.mxu0
    %v1096 = vpop.f32.mrf.mxu0
    %v1097 = vadd.f32 0.0, %v1096
    %v1098 = vpop.f32.mrf.mxu0
    %1099 = vdwg.mxu0
    %1100 = vrot.lane.b32.xlu0 %v961, 120
    %v1101 = vpop.permute.xlu0 %1100
    %1102 = vrot.lane.b32.xlu0 %v978, 88
    %v1103 = vpop.permute.xlu0 %1102
    %v1105 = vsel %vm417, %v1101, 0
    %v1108 = vsel %vm417, %v1103, 0
    %1110 = vmatprep.subr.bf16.mxu0 0
    %1111 = vmatpush1.bf16.xpose.msra.mxu0 0
    %1112 = vmatprep.subr.bf16.mxu0 0
    %1113 = vmatpush1.bf16.xpose.msra.mxu0 0
    %1114 = vmatprep.subr.bf16.mxu0 0
    %1115 = vmatpush1.bf16.xpose.msra.mxu0 0
    %1116 = vmatprep.subr.bf16.mxu0 0
    %1117 = vmatpush1.bf16.xpose.msra.mxu0 0
    %1118 = vmatprep.subr.bf16.mxu0 0
    %1119 = vmatpush1.bf16.xpose.msra.mxu0 0
    %1120 = vmatprep.subr.bf16.mxu0 0
    %1121 = vmatpush1.bf16.xpose.msra.mxu0 0
    %1122 = vmatprep.subr.bf16.mxu0 0
    %1123 = vmatpush1.bf16.xpose.msra.mxu0 0
    %1124 = vmatprep.subr.bf16.mxu0 0
    %1125 = vmatpush1.bf16.xpose.msra.mxu0 %v1108
    %1126 = vmatprep.subr.bf16.mxu0 0
    %1127 = vmatpush2.bf16.xpose.msra.mxu0 0
    %1128 = vmatprep.subr.bf16.mxu0 0
    %1129 = vmatpush2.bf16.xpose.msra.mxu0 0
    %1130 = vmatprep.subr.bf16.mxu0 0
    %1131 = vmatpush2.bf16.xpose.msra.mxu0 0
    %1132 = vmatprep.subr.bf16.mxu0 0
    %1133 = vmatpush2.bf16.xpose.msra.mxu0 0
    %1134 = vmatprep.subr.bf16.mxu0 0
    %1135 = vmatpush2.bf16.xpose.msra.mxu0 0
    %1136 = vmatprep.subr.bf16.mxu0 0
    %1137 = vmatpush2.bf16.xpose.msra.mxu0 0
    %1138 = vmatprep.subr.bf16.mxu0 0
    %1139 = vmatpush2.bf16.xpose.msra.mxu0 0
    %1140 = vmatprep.subr.bf16.mxu0 0
    %1141 = vmatpush2.bf16.xpose.msra.mxu0 0
    %1142 = vmatprep.mubr.bf16.mxu0 0
    %1143 = vmatmul.mubr.bf16.gmra.mxu0 %v1105
    %v1144 = vpop.f32.mrf.mxu0
    %v1145 = vadd.f32 0.0, %v1144
    %v1146 = vpop.f32.mrf.mxu0
    %v1147 = vpop.f32.mrf.mxu0
    %v1148 = vadd.f32 0.0, %v1147
    %v1149 = vpop.f32.mrf.mxu0
    %1150 = vdwg.mxu0
    %v1151 = vsel %vm465, %v1145, -inf
    %1152 = vmax.xlane.f32.xlu0 %v1151
    %v1153 = vpop.xlane.xlu0 %1152
    %v1154 = vsel %vm469, %v1148, -inf
    %1155 = vmax.xlane.f32.xlu0 %v1154
    %v1156 = vpop.xlane.xlu0 %1155
    %v1157 = vsub.f32 %v1145, %v1153
    %v1158 = vsub.f32 %v1148, %v1156
    %v1159 = vmul.f32 %v1157, 1.442695
    %v1160 = vpow.pop %v1159
    %v1161 = vmul.f32 %v1158, 1.442695
    %v1162 = vpow.pop %v1161
    %v1163 = vsel %vm465, %v1160, 0.0
    %1164 = vadd.xlane.f32.xlu0 %v1163
    %v1165 = vpop.xlane.xlu0 %1164
    %v1166 = vsel %vm469, %v1162, 0.0
    %1167 = vadd.xlane.f32.xlu0 %v1166
    %v1168 = vpop.xlane.xlu0 %1167
    %v1169 = vrcp.pop %v1165
    %v1170 = vrcp.pop %v1168
    %v1171 = vmul.f32 %v1160, %v1169
    %v1172 = vmul.f32 %v1162, %v1170
    %v1173 = vpack.c.bf16 %v1172, %v1171
    %1174 = vrot.lane.b32.xlu0 %v978, 56
    %v1175 = vpop.permute.xlu0 %1174
    %v1177 = vsel %vm465, %v1173, 0
    %v1180 = vand.u32 %v1175, %v498
    %1182 = vmatprep.subr.bf16.mxu0 0
    %1183 = vmatpush1.bf16.msra.mxu0 0
    %1184 = vmatprep.subr.bf16.mxu0 0
    %1185 = vmatpush1.bf16.msra.mxu0 0
    %1186 = vmatprep.subr.bf16.mxu0 0
    %1187 = vmatpush1.bf16.msra.mxu0 0
    %1188 = vmatprep.subr.bf16.mxu0 0
    %1189 = vmatpush1.bf16.msra.mxu0 0
    %1190 = vmatprep.subr.bf16.mxu0 0
    %1191 = vmatpush1.bf16.msra.mxu0 0
    %1192 = vmatprep.subr.bf16.mxu0 0
    %1193 = vmatpush1.bf16.msra.mxu0 0
    %1194 = vmatprep.subr.bf16.mxu0 0
    %1195 = vmatpush1.bf16.msra.mxu0 0
    %1196 = vmatprep.subr.bf16.mxu0 0
    %1197 = vmatpush1.bf16.msra.mxu0 %v1180
    %1198 = vmatprep.subr.bf16.mxu0 0
    %1199 = vmatpush2.bf16.msra.mxu0 0
    %1200 = vmatprep.subr.bf16.mxu0 0
    %1201 = vmatpush2.bf16.msra.mxu0 0
    %1202 = vmatprep.subr.bf16.mxu0 0
    %1203 = vmatpush2.bf16.msra.mxu0 0
    %1204 = vmatprep.subr.bf16.mxu0 0
    %1205 = vmatpush2.bf16.msra.mxu0 0
    %1206 = vmatprep.subr.bf16.mxu0 0
    %1207 = vmatpush2.bf16.msra.mxu0 0
    %1208 = vmatprep.subr.bf16.mxu0 0
    %1209 = vmatpush2.bf16.msra.mxu0 0
    %1210 = vmatprep.subr.bf16.mxu0 0
    %1211 = vmatpush2.bf16.msra.mxu0 0
    %1212 = vmatprep.subr.bf16.mxu0 0
    %1213 = vmatpush2.bf16.msra.mxu0 0
    %1214 = vmatprep.mubr.bf16.mxu0 0
    %1215 = vmatmul.mubr.bf16.gmra.mxu0 %v1177
    %v1216 = vpop.f32.mrf.mxu0
    %v1217 = vadd.f32 0.0, %v1216
    %v1218 = vpop.f32.mrf.mxu0
    %v1219 = vpop.f32.mrf.mxu0
    %v1220 = vadd.f32 0.0, %v1219
    %v1221 = vpop.f32.mrf.mxu0
    %1222 = vdwg.mxu0
    %1223 = vrot.lane.b32.xlu0 %v961, 112
    %v1224 = vpop.permute.xlu0 %1223
    %1225 = vrot.lane.b32.xlu0 %v978, 80
    %v1226 = vpop.permute.xlu0 %1225
    %v1228 = vsel %vm417, %v1224, 0
    %v1231 = vsel %vm417, %v1226, 0
    %1233 = vmatprep.subr.bf16.mxu0 0
    %1234 = vmatpush1.bf16.xpose.msra.mxu0 0
    %1235 = vmatprep.subr.bf16.mxu0 0
    %1236 = vmatpush1.bf16.xpose.msra.mxu0 0
    %1237 = vmatprep.subr.bf16.mxu0 0
    %1238 = vmatpush1.bf16.xpose.msra.mxu0 0
    %1239 = vmatprep.subr.bf16.mxu0 0
    %1240 = vmatpush1.bf16.xpose.msra.mxu0 0
    %1241 = vmatprep.subr.bf16.mxu0 0
    %1242 = vmatpush1.bf16.xpose.msra.mxu0 0
    %1243 = vmatprep.subr.bf16.mxu0 0
    %1244 = vmatpush1.bf16.xpose.msra.mxu0 0
    %1245 = vmatprep.subr.bf16.mxu0 0
    %1246 = vmatpush1.bf16.xpose.msra.mxu0 0
    %1247 = vmatprep.subr.bf16.mxu0 0
    %1248 = vmatpush1.bf16.xpose.msra.mxu0 %v1231
    %1249 = vmatprep.subr.bf16.mxu0 0
    %1250 = vmatpush2.bf16.xpose.msra.mxu0 0
    %1251 = vmatprep.subr.bf16.mxu0 0
    %1252 = vmatpush2.bf16.xpose.msra.mxu0 0
    %1253 = vmatprep.subr.bf16.mxu0 0
    %1254 = vmatpush2.bf16.xpose.msra.mxu0 0
    %1255 = vmatprep.subr.bf16.mxu0 0
    %1256 = vmatpush2.bf16.xpose.msra.mxu0 0
    %1257 = vmatprep.subr.bf16.mxu0 0
    %1258 = vmatpush2.bf16.xpose.msra.mxu0 0
    %1259 = vmatprep.subr.bf16.mxu0 0
    %1260 = vmatpush2.bf16.xpose.msra.mxu0 0
    %1261 = vmatprep.subr.bf16.mxu0 0
    %1262 = vmatpush2.bf16.xpose.msra.mxu0 0
    %1263 = vmatprep.subr.bf16.mxu0 0
    %1264 = vmatpush2.bf16.xpose.msra.mxu0 0
    %1265 = vmatprep.mubr.bf16.mxu0 0
    %1266 = vmatmul.mubr.bf16.gmra.mxu0 %v1228
    %v1267 = vpop.f32.mrf.mxu0
    %v1268 = vadd.f32 0.0, %v1267
    %v1269 = vpop.f32.mrf.mxu0
    %v1270 = vpop.f32.mrf.mxu0
    %v1271 = vadd.f32 0.0, %v1270
    %v1272 = vpop.f32.mrf.mxu0
    %1273 = vdwg.mxu0
    %v1274 = vsel %vm465, %v1268, -inf
    %1275 = vmax.xlane.f32.xlu0 %v1274
    %v1276 = vpop.xlane.xlu0 %1275
    %v1277 = vsel %vm469, %v1271, -inf
    %1278 = vmax.xlane.f32.xlu0 %v1277
    %v1279 = vpop.xlane.xlu0 %1278
    %v1280 = vsub.f32 %v1268, %v1276
    %v1281 = vsub.f32 %v1271, %v1279
    %v1282 = vmul.f32 %v1280, 1.442695
    %v1283 = vpow.pop %v1282
    %v1284 = vmul.f32 %v1281, 1.442695
    %v1285 = vpow.pop %v1284
    %v1286 = vsel %vm465, %v1283, 0.0
    %1287 = vadd.xlane.f32.xlu0 %v1286
    %v1288 = vpop.xlane.xlu0 %1287
    %v1289 = vsel %vm469, %v1285, 0.0
    %1290 = vadd.xlane.f32.xlu0 %v1289
    %v1291 = vpop.xlane.xlu0 %1290
    %v1292 = vrcp.pop %v1288
    %v1293 = vrcp.pop %v1291
    %v1294 = vmul.f32 %v1283, %v1292
    %v1295 = vmul.f32 %v1285, %v1293
    %v1296 = vpack.c.bf16 %v1295, %v1294
    %1297 = vrot.lane.b32.xlu0 %v978, 48
    %v1298 = vpop.permute.xlu0 %1297
    %v1300 = vsel %vm465, %v1296, 0
    %v1303 = vand.u32 %v1298, %v498
    %1305 = vmatprep.subr.bf16.mxu0 0
    %1306 = vmatpush1.bf16.msra.mxu0 0
    %1307 = vmatprep.subr.bf16.mxu0 0
    %1308 = vmatpush1.bf16.msra.mxu0 0
    %1309 = vmatprep.subr.bf16.mxu0 0
    %1310 = vmatpush1.bf16.msra.mxu0 0
    %1311 = vmatprep.subr.bf16.mxu0 0
    %1312 = vmatpush1.bf16.msra.mxu0 0
    %1313 = vmatprep.subr.bf16.mxu0 0
    %1314 = vmatpush1.bf16.msra.mxu0 0
    %1315 = vmatprep.subr.bf16.mxu0 0
    %1316 = vmatpush1.bf16.msra.mxu0 0
    %1317 = vmatprep.subr.bf16.mxu0 0
    %1318 = vmatpush1.bf16.msra.mxu0 0
    %1319 = vmatprep.subr.bf16.mxu0 0
    %1320 = vmatpush1.bf16.msra.mxu0 %v1303
    %1321 = vmatprep.subr.bf16.mxu0 0
    %1322 = vmatpush2.bf16.msra.mxu0 0
    %1323 = vmatprep.subr.bf16.mxu0 0
    %1324 = vmatpush2.bf16.msra.mxu0 0
    %1325 = vmatprep.subr.bf16.mxu0 0
    %1326 = vmatpush2.bf16.msra.mxu0 0
    %1327 = vmatprep.subr.bf16.mxu0 0
    %1328 = vmatpush2.bf16.msra.mxu0 0
    %1329 = vmatprep.subr.bf16.mxu0 0
    %1330 = vmatpush2.bf16.msra.mxu0 0
    %1331 = vmatprep.subr.bf16.mxu0 0
    %1332 = vmatpush2.bf16.msra.mxu0 0
    %1333 = vmatprep.subr.bf16.mxu0 0
    %1334 = vmatpush2.bf16.msra.mxu0 0
    %1335 = vmatprep.subr.bf16.mxu0 0
    %1336 = vmatpush2.bf16.msra.mxu0 0
    %1337 = vmatprep.mubr.bf16.mxu0 0
    %1338 = vmatmul.mubr.bf16.gmra.mxu0 %v1300
    %v1339 = vpop.f32.mrf.mxu0
    %v1340 = vadd.f32 0.0, %v1339
    %v1341 = vpop.f32.mrf.mxu0
    %v1342 = vpop.f32.mrf.mxu0
    %v1343 = vadd.f32 0.0, %v1342
    %v1344 = vpop.f32.mrf.mxu0
    %1345 = vdwg.mxu0
    %1346 = vrot.lane.b32.xlu0 %v961, 104
    %v1347 = vpop.permute.xlu0 %1346
    %1348 = vrot.lane.b32.xlu0 %v978, 72
    %v1349 = vpop.permute.xlu0 %1348
    %v1351 = vsel %vm417, %v1347, 0
    %v1354 = vsel %vm417, %v1349, 0
    %1356 = vmatprep.subr.bf16.mxu0 0
    %1357 = vmatpush1.bf16.xpose.msra.mxu0 0
    %1358 = vmatprep.subr.bf16.mxu0 0
    %1359 = vmatpush1.bf16.xpose.msra.mxu0 0
    %1360 = vmatprep.subr.bf16.mxu0 0
    %1361 = vmatpush1.bf16.xpose.msra.mxu0 0
    %1362 = vmatprep.subr.bf16.mxu0 0
    %1363 = vmatpush1.bf16.xpose.msra.mxu0 0
    %1364 = vmatprep.subr.bf16.mxu0 0
    %1365 = vmatpush1.bf16.xpose.msra.mxu0 0
    %1366 = vmatprep.subr.bf16.mxu0 0
    %1367 = vmatpush1.bf16.xpose.msra.mxu0 0
    %1368 = vmatprep.subr.bf16.mxu0 0
    %1369 = vmatpush1.bf16.xpose.msra.mxu0 0
    %1370 = vmatprep.subr.bf16.mxu0 0
    %1371 = vmatpush1.bf16.xpose.msra.mxu0 %v1354
    %1372 = vmatprep.subr.bf16.mxu0 0
    %1373 = vmatpush2.bf16.xpose.msra.mxu0 0
    %1374 = vmatprep.subr.bf16.mxu0 0
    %1375 = vmatpush2.bf16.xpose.msra.mxu0 0
    %1376 = vmatprep.subr.bf16.mxu0 0
    %1377 = vmatpush2.bf16.xpose.msra.mxu0 0
    %1378 = vmatprep.subr.bf16.mxu0 0
    %1379 = vmatpush2.bf16.xpose.msra.mxu0 0
    %1380 = vmatprep.subr.bf16.mxu0 0
    %1381 = vmatpush2.bf16.xpose.msra.mxu0 0
    %1382 = vmatprep.subr.bf16.mxu0 0
    %1383 = vmatpush2.bf16.xpose.msra.mxu0 0
    %1384 = vmatprep.subr.bf16.mxu0 0
    %1385 = vmatpush2.bf16.xpose.msra.mxu0 0
    %1386 = vmatprep.subr.bf16.mxu0 0
    %1387 = vmatpush2.bf16.xpose.msra.mxu0 0
    %1388 = vmatprep.mubr.bf16.mxu0 0
    %1389 = vmatmul.mubr.bf16.gmra.mxu0 %v1351
    %v1390 = vpop.f32.mrf.mxu0
    %v1391 = vadd.f32 0.0, %v1390
    %v1392 = vpop.f32.mrf.mxu0
    %v1393 = vpop.f32.mrf.mxu0
    %v1394 = vadd.f32 0.0, %v1393
    %v1395 = vpop.f32.mrf.mxu0
    %1396 = vdwg.mxu0
    %v1397 = vsel %vm465, %v1391, -inf
    %1398 = vmax.xlane.f32.xlu0 %v1397
    %v1399 = vpop.xlane.xlu0 %1398
    %v1400 = vsel %vm469, %v1394, -inf
    %1401 = vmax.xlane.f32.xlu0 %v1400
    %v1402 = vpop.xlane.xlu0 %1401
    %v1403 = vsub.f32 %v1391, %v1399
    %v1404 = vsub.f32 %v1394, %v1402
    %v1405 = vmul.f32 %v1403, 1.442695
    %v1406 = vpow.pop %v1405
    %v1407 = vmul.f32 %v1404, 1.442695
    %v1408 = vpow.pop %v1407
    %v1409 = vsel %vm465, %v1406, 0.0
    %1410 = vadd.xlane.f32.xlu0 %v1409
    %v1411 = vpop.xlane.xlu0 %1410
    %v1412 = vsel %vm469, %v1408, 0.0
    %1413 = vadd.xlane.f32.xlu0 %v1412
    %v1414 = vpop.xlane.xlu0 %1413
    %v1415 = vrcp.pop %v1411
    %v1416 = vrcp.pop %v1414
    %v1417 = vmul.f32 %v1406, %v1415
    %v1418 = vmul.f32 %v1408, %v1416
    %v1419 = vpack.c.bf16 %v1418, %v1417
    %1420 = vrot.lane.b32.xlu0 %v978, 40
    %v1421 = vpop.permute.xlu0 %1420
    %v1423 = vsel %vm465, %v1419, 0
    %v1426 = vand.u32 %v1421, %v498
    %1428 = vmatprep.subr.bf16.mxu0 0
    %1429 = vmatpush1.bf16.msra.mxu0 0
    %1430 = vmatprep.subr.bf16.mxu0 0
    %1431 = vmatpush1.bf16.msra.mxu0 0
    %1432 = vmatprep.subr.bf16.mxu0 0
    %1433 = vmatpush1.bf16.msra.mxu0 0
    %1434 = vmatprep.subr.bf16.mxu0 0
    %1435 = vmatpush1.bf16.msra.mxu0 0
    %1436 = vmatprep.subr.bf16.mxu0 0
    %1437 = vmatpush1.bf16.msra.mxu0 0
    %1438 = vmatprep.subr.bf16.mxu0 0
    %1439 = vmatpush1.bf16.msra.mxu0 0
    %1440 = vmatprep.subr.bf16.mxu0 0
    %1441 = vmatpush1.bf16.msra.mxu0 0
    %1442 = vmatprep.subr.bf16.mxu0 0
    %1443 = vmatpush1.bf16.msra.mxu0 %v1426
    %1444 = vmatprep.subr.bf16.mxu0 0
    %1445 = vmatpush2.bf16.msra.mxu0 0
    %1446 = vmatprep.subr.bf16.mxu0 0
    %1447 = vmatpush2.bf16.msra.mxu0 0
    %1448 = vmatprep.subr.bf16.mxu0 0
    %1449 = vmatpush2.bf16.msra.mxu0 0
    %1450 = vmatprep.subr.bf16.mxu0 0
    %1451 = vmatpush2.bf16.msra.mxu0 0
    %1452 = vmatprep.subr.bf16.mxu0 0
    %1453 = vmatpush2.bf16.msra.mxu0 0
    %1454 = vmatprep.subr.bf16.mxu0 0
    %1455 = vmatpush2.bf16.msra.mxu0 0
    %1456 = vmatprep.subr.bf16.mxu0 0
    %1457 = vmatpush2.bf16.msra.mxu0 0
    %1458 = vmatprep.subr.bf16.mxu0 0
    %1459 = vmatpush2.bf16.msra.mxu0 0
    %1460 = vmatprep.mubr.bf16.mxu0 0
    %1461 = vmatmul.mubr.bf16.gmra.mxu0 %v1423
    %v1462 = vpop.f32.mrf.mxu0
    %v1463 = vadd.f32 0.0, %v1462
    %v1464 = vpop.f32.mrf.mxu0
    %v1465 = vpop.f32.mrf.mxu0
    %v1466 = vadd.f32 0.0, %v1465
    %v1467 = vpop.f32.mrf.mxu0
    %1468 = vdwg.mxu0
    %1471 = vrot.lane.b32.xlu0 %v1217, 8
    %v1472 = vpop.permute.xlu0 %1471
    %1473 = vrot.lane.b32.xlu0 %v1220, 8
    %v1474 = vpop.permute.xlu0 %1473
    %1479 = vrot.lane.b32.xlu0 %v1340, 16
    %v1480 = vpop.permute.xlu0 %1479
    %1481 = vrot.lane.b32.xlu0 %v1343, 16
    %v1482 = vpop.permute.xlu0 %1481
    %1487 = vrot.lane.b32.xlu0 %v1463, 24
    %v1488 = vpop.permute.xlu0 %1487
    %1489 = vrot.lane.b32.xlu0 %v1466, 24
    %v1490 = vpop.permute.xlu0 %1489
    %v1493 = vsel %vm417, %v1094, %v1472
    %v1494 = vsel %vm417, %v1097, %v1474
    %v1495 = vsel %vm939, %v1493, %v1480
    %v1496 = vsel %vm939, %v1494, %v1482
    %v1497 = vsel %vm942, %v1495, %v1488
    %v1498 = vsel %vm942, %v1496, %v1490
    %v1501 = vrot.slane %v1497, 7
    %v1502 = vrot.slane %v1498, 7
    %v1503 = vsel %vm176, %v1501, %v1502
    %v1506 = vsel %vm176, %v944, %v1501
    %v1507 = vpack.c.bf16 %v1506, %v943
    %v1508 = vpack.c.bf16 %v1503, %v1503
    %v1509 = vld [vmem:[%s9] sm:$0xf]
    %v1510 = vld [vmem:[%s9 + $0x4] sm:$0xf]
    %v1511 = vld [vmem:[%s9 + $0x8] sm:$0xf]
    %v1512 = vld [vmem:[%s9 + $0xc] sm:$0xf]
    %v1513 = vld [vmem:[%s10] sm:$0x1]
    %v1515 = vlaneseq
    %v1516 = vshrl.u32 %v1515, 7
    %v1517 = vsub.s32 0, %v1516
    %v1518 = vrot.slane %v1513, %v1517
    %v1524 = vunpack.c.l.b16 %v1509
    %v1525 = vunpack.c.l.b16 %v1510
    %v1526 = vunpack.c.l.b16 %v1511
    %v1527 = vunpack.c.l.b16 %v1512
    %v1528 = vpack.c.b16 %v1525, %v1524
    %v1529 = vpack.c.b16 %v1527, %v1526
    %v1533 = vsel %vm101, %v1507, 0
    %v1536 = vsel %vm101, %v1508, 0
    %1538 = vmatprep.subr.bf16.mxu0 0
    %1539 = vmatpush1.bf16.msra.mxu0 0
    %1540 = vmatprep.subr.bf16.mxu0 0
    %1541 = vmatpush1.bf16.msra.mxu0 0
    %1542 = vmatprep.subr.bf16.mxu0 0
    %1543 = vmatpush1.bf16.msra.mxu0 0
    %1544 = vmatprep.subr.bf16.mxu0 0
    %1545 = vmatpush1.bf16.msra.mxu0 0
    %1546 = vmatprep.subr.bf16.mxu0 0
    %1547 = vmatpush1.bf16.msra.mxu0 0
    %1548 = vmatprep.subr.bf16.mxu0 0
    %1549 = vmatpush1.bf16.msra.mxu0 0
    %1550 = vmatprep.subr.bf16.mxu0 0
    %1551 = vmatpush1.bf16.msra.mxu0 %v1529
    %1552 = vmatprep.subr.bf16.mxu0 0
    %1553 = vmatpush1.bf16.msra.mxu0 %v1528
    %1554 = vmatprep.subr.bf16.mxu0 0
    %1555 = vmatpush2.bf16.msra.mxu0 0
    %1556 = vmatprep.subr.bf16.mxu0 0
    %1557 = vmatpush2.bf16.msra.mxu0 0
    %1558 = vmatprep.subr.bf16.mxu0 0
    %1559 = vmatpush2.bf16.msra.mxu0 0
    %1560 = vmatprep.subr.bf16.mxu0 0
    %1561 = vmatpush2.bf16.msra.mxu0 0
    %1562 = vmatprep.subr.bf16.mxu0 0
    %1563 = vmatpush2.bf16.msra.mxu0 0
    %1564 = vmatprep.subr.bf16.mxu0 0
    %1565 = vmatpush2.bf16.msra.mxu0 0
    %1566 = vmatprep.subr.bf16.mxu0 0
    %1567 = vmatpush2.bf16.msra.mxu0 0
    %1568 = vmatprep.subr.bf16.mxu0 0
    %1569 = vmatpush2.bf16.msra.mxu0 0
    %1570 = vmatprep.mubr.bf16.mxu0 0
    %1571 = vmatmul.mubr.bf16.gmra.mxu0 %v1533
    %v1572 = vpop.f32.mrf.mxu0
    %v1573 = vadd.f32 %v1518, %v1572
    %v1574 = vpop.f32.mrf.mxu0
    %v1575 = vpop.f32.mrf.mxu0
    %v1576 = vadd.f32 %v1518, %v1575
    %v1577 = vpop.f32.mrf.mxu0
    %1578 = vmatprep.mubr.bf16.mxu0 0
    %1579 = vmatmul.mubr.bf16.gmra.mxu0 %v1536
    %v1580 = vpop.f32.mrf.mxu0
    %v1581 = vadd.f32 %v1518, %v1580
    %v1582 = vpop.f32.mrf.mxu0
    %v1583 = vpop.f32.mrf.mxu0
    %v1584 = vpop.f32.mrf.mxu0
    %1585 = vdwg.mxu0
    %v1586 = vadd.f32 %v264, %v1573
    %v1587 = vadd.f32 %v265, %v1576
    %v1588 = vadd.f32 %v266, %v1581
    %v1589 = vld [vmem:[%s11] sm:$0x1]
    %v1590 = vld [vmem:[%s12] sm:$0x1]
    %v1591 = vsel %vm101, %v1586, 0.0
    %1592 = vadd.xlane.f32.xlu0 %v1591
    %v1593 = vpop.xlane.xlu0 %1592
    %v1594 = vsel %vm101, %v1587, 0.0
    %1595 = vadd.xlane.f32.xlu0 %v1594
    %v1596 = vpop.xlane.xlu0 %1595
    %v1597 = vsel %vm275, %v1588, 0.0
    %1598 = vadd.xlane.f32.xlu0 %v1597
    %v1599 = vpop.xlane.xlu0 %1598
    %v1600 = vmul.f32 %v1593, %v279
    %v1601 = vmul.f32 %v1596, %v279
    %v1602 = vmul.f32 %v1599, %v279
    %v1603 = vsub.f32 %v1586, %v1600
    %v1604 = vsub.f32 %v1587, %v1601
    %v1605 = vsub.f32 %v1588, %v1602
    %v1606 = vmul.f32 %v1603, %v1603
    %v1607 = vmul.f32 %v1604, %v1604
    %v1608 = vmul.f32 %v1605, %v1605
    %v1609 = vsel %vm101, %v1606, 0.0
    %1610 = vadd.xlane.f32.xlu0 %v1609
    %v1611 = vpop.xlane.xlu0 %1610
    %v1612 = vsel %vm101, %v1607, 0.0
    %1613 = vadd.xlane.f32.xlu0 %v1612
    %v1614 = vpop.xlane.xlu0 %1613
    %v1615 = vsel %vm275, %v1608, 0.0
    %1616 = vadd.xlane.f32.xlu0 %v1615
    %v1617 = vpop.xlane.xlu0 %1616
    %v1618 = vmul.f32 %v1611, %v279
    %v1619 = vmul.f32 %v1614, %v279
    %v1620 = vmul.f32 %v1617, %v279
    %v1621 = vadd.f32 %v1618, 1e-05
    %v1622 = vadd.f32 %v1619, 1e-05
    %v1623 = vadd.f32 %v1620, 1e-05
    %v1624 = vrsqrt.pop %v1621
    %v1625 = vrsqrt.pop %v1622
    %v1626 = vrsqrt.pop %v1623
    %v1627 = vmul.f32 %v1603, %v1624
    %v1628 = vmul.f32 %v1604, %v1625
    %v1629 = vmul.f32 %v1605, %v1626
    %v1631 = vlaneseq
    %v1632 = vshrl.u32 %v1631, 7
    %v1633 = vsub.s32 0, %v1632
    %v1634 = vrot.slane %v1589, %v1633
    %v1636 = vmul.f32 %v1627, %v1634
    %v1637 = vmul.f32 %v1628, %v1634
    %v1638 = vmul.f32 %v1629, %v1634
    %v1640 = vlaneseq
    %v1641 = vshrl.u32 %v1640, 7
    %v1642 = vsub.s32 0, %v1641
    %v1643 = vrot.slane %v1590, %v1642
    %v1645 = vadd.f32 %v1636, %v1643
    %v1646 = vadd.f32 %v1637, %v1643
    %v1647 = vadd.f32 %v1638, %v1643
    %v1648 = vpack.c.bf16 %v1646, %v1645
    %v1649 = vpack.c.bf16 %v1647, %v1647
    %v1650 = vld [vmem:[%s13] sm:$0xf]
    %v1651 = vld [vmem:[%s13 + $0x4] sm:$0xf]
    %v1652 = vld [vmem:[%s13 + $0x8] sm:$0xf]
    %v1653 = vld [vmem:[%s13 + $0xc] sm:$0xf]
    %v1654 = vld [vmem:[%s14] sm:$0x1]
    %v1656 = vlaneseq
    %v1657 = vshrl.u32 %v1656, 7
    %v1658 = vsub.s32 0, %v1657
    %v1659 = vrot.slane %v1654, %v1658
    %v1665 = vunpack.c.l.b16 %v1650
    %v1666 = vunpack.c.l.b16 %v1651
    %v1667 = vunpack.c.l.b16 %v1652
    %v1668 = vunpack.c.l.b16 %v1653
    %v1669 = vpack.c.b16 %v1666, %v1665
    %v1670 = vpack.c.b16 %v1668, %v1667
    %v1674 = vsel %vm101, %v1648, 0
    %v1677 = vsel %vm101, %v1649, 0
    %1679 = vmatprep.subr.bf16.mxu0 0
    %1680 = vmatpush1.bf16.msra.mxu0 0
    %1681 = vmatprep.subr.bf16.mxu0 0
    %1682 = vmatpush1.bf16.msra.mxu0 0
    %1683 = vmatprep.subr.bf16.mxu0 0
    %1684 = vmatpush1.bf16.msra.mxu0 0
    %1685 = vmatprep.subr.bf16.mxu0 0
    %1686 = vmatpush1.bf16.msra.mxu0 0
    %1687 = vmatprep.subr.bf16.mxu0 0
    %1688 = vmatpush1.bf16.msra.mxu0 0
    %1689 = vmatprep.subr.bf16.mxu0 0
    %1690 = vmatpush1.bf16.msra.mxu0 0
    %1691 = vmatprep.subr.bf16.mxu0 0
    %1692 = vmatpush1.bf16.msra.mxu0 %v1670
    %1693 = vmatprep.subr.bf16.mxu0 0
    %1694 = vmatpush1.bf16.msra.mxu0 %v1669
    %1695 = vmatprep.subr.bf16.mxu0 0
    %1696 = vmatpush2.bf16.msra.mxu0 0
    %1697 = vmatprep.subr.bf16.mxu0 0
    %1698 = vmatpush2.bf16.msra.mxu0 0
    %1699 = vmatprep.subr.bf16.mxu0 0
    %1700 = vmatpush2.bf16.msra.mxu0 0
    %1701 = vmatprep.subr.bf16.mxu0 0
    %1702 = vmatpush2.bf16.msra.mxu0 0
    %1703 = vmatprep.subr.bf16.mxu0 0
    %1704 = vmatpush2.bf16.msra.mxu0 0
    %1705 = vmatprep.subr.bf16.mxu0 0
    %1706 = vmatpush2.bf16.msra.mxu0 0
    %1707 = vmatprep.subr.bf16.mxu0 0
    %1708 = vmatpush2.bf16.msra.mxu0 0
    %1709 = vmatprep.subr.bf16.mxu0 0
    %1710 = vmatpush2.bf16.msra.mxu0 0
    %1711 = vmatprep.mubr.bf16.mxu0 0
    %1712 = vmatmul.mubr.bf16.gmra.mxu0 %v1674
    %v1713 = vpop.f32.mrf.mxu0
    %v1714 = vadd.f32 %v1659, %v1713
    %v1715 = vpop.f32.mrf.mxu0
    %v1716 = vpop.f32.mrf.mxu0
    %v1717 = vadd.f32 %v1659, %v1716
    %v1718 = vpop.f32.mrf.mxu0
    %1719 = vmatprep.mubr.bf16.mxu0 0
    %1720 = vmatmul.mubr.bf16.gmra.mxu0 %v1677
    %v1721 = vpop.f32.mrf.mxu0
    %v1722 = vadd.f32 %v1659, %v1721
    %v1723 = vpop.f32.mrf.mxu0
    %v1724 = vpop.f32.mrf.mxu0
    %v1725 = vpop.f32.mrf.mxu0
    %1726 = vdwg.mxu0
    %v1727 = vmul.f32 %v1714, 0.5
    %v1728 = vmul.f32 %v1717, 0.5
    %v1729 = vmul.f32 %v1722, 0.5
    %v1730 = vmul.f32 %v1714, 0.044715
    %v1731 = vmul.f32 %v1717, 0.044715
    %v1732 = vmul.f32 %v1722, 0.044715
    %v1733 = vmul.f32 %v1730, %v1714
    %v1734 = vmul.f32 %v1731, %v1717
    %v1735 = vmul.f32 %v1732, %v1722
    %v1736 = vmul.f32 %v1733, %v1714
    %v1737 = vmul.f32 %v1734, %v1717
    %v1738 = vmul.f32 %v1735, %v1722
    %v1739 = vadd.f32 %v1714, %v1736
    %v1740 = vadd.f32 %v1717, %v1737
    %v1741 = vadd.f32 %v1722, %v1738
    %v1742 = vmul.f32 %v1739, 0.7978846
    %v1743 = vmul.f32 %v1740, 0.7978846
    %v1744 = vmul.f32 %v1741, 0.7978846
    %v1745 = vtanh.pop %v1742
    %v1746 = vtanh.pop %v1743
    %v1747 = vtanh.pop %v1744
    %v1748 = vadd.f32 %v1745, 1.0
    %v1749 = vadd.f32 %v1746, 1.0
    %v1750 = vadd.f32 %v1747, 1.0
    %v1751 = vmul.f32 %v1727, %v1748
    %v1752 = vmul.f32 %v1728, %v1749
    %v1753 = vmul.f32 %v1729, %v1750
    %v1754 = vpack.c.bf16 %v1752, %v1751
    %v1755 = vpack.c.bf16 %v1753, %v1753
    %v1756 = vld [vmem:[%s15] sm:$0xf]
    %v1757 = vld [vmem:[%s15 + $0x4] sm:$0xf]
    %v1758 = vld [vmem:[%s15 + $0x8] sm:$0xf]
    %v1759 = vld [vmem:[%s15 + $0xc] sm:$0xf]
    %v1760 = vld [vmem:[%s15 + $0x10] sm:$0xf]
    %v1761 = vld [vmem:[%s15 + $0x14] sm:$0xf]
    %v1762 = vld [vmem:[%s15 + $0x18] sm:$0xf]
    %v1763 = vld [vmem:[%s15 + $0x1c] sm:$0xf]
    %v1764 = vld [vmem:[%s15 + $0x20] sm:$0xf]
    %v1765 = vld [vmem:[%s15 + $0x24] sm:$0xf]
    %v1766 = vld [vmem:[%s15 + $0x28] sm:$0xf]
    %v1767 = vld [vmem:[%s15 + $0x2c] sm:$0xf]
    %v1768 = vld [vmem:[%s15 + $0x30] sm:$0xf]
    %v1769 = vld [vmem:[%s15 + $0x34] sm:$0xf]
    %v1770 = vld [vmem:[%s15 + $0x38] sm:$0xf]
    %v1771 = vld [vmem:[%s15 + $0x3c] sm:$0xf]
    %v1772 = vld [vmem:[%s16] sm:$0x1]
    %v1774 = vlaneseq
    %v1775 = vshrl.u32 %v1774, 7
    %v1776 = vsub.s32 0, %v1775
    %v1777 = vrot.slane %v1772, %v1776
    %v1795 = vunpack.c.l.b16 %v1756
    %v1796 = vunpack.c.l.b16 %v1757
    %v1797 = vunpack.c.l.b16 %v1758
    %v1798 = vunpack.c.l.b16 %v1759
    %v1799 = vunpack.c.l.b16 %v1760
    %v1800 = vunpack.c.l.b16 %v1761
    %v1801 = vunpack.c.l.b16 %v1762
    %v1802 = vunpack.c.l.b16 %v1763
    %v1803 = vunpack.c.l.b16 %v1764
    %v1804 = vunpack.c.l.b16 %v1765
    %v1805 = vunpack.c.l.b16 %v1766
    %v1806 = vunpack.c.l.b16 %v1767
    %v1807 = vunpack.c.l.b16 %v1768
    %v1808 = vunpack.c.l.b16 %v1769
    %v1809 = vunpack.c.l.b16 %v1770
    %v1810 = vunpack.c.l.b16 %v1771
    %v1811 = vpack.c.b16 %v1796, %v1795
    %v1812 = vpack.c.b16 %v1798, %v1797
    %v1813 = vpack.c.b16 %v1800, %v1799
    %v1814 = vpack.c.b16 %v1802, %v1801
    %v1815 = vpack.c.b16 %v1804, %v1803
    %v1816 = vpack.c.b16 %v1806, %v1805
    %v1817 = vpack.c.b16 %v1808, %v1807
    %v1818 = vpack.c.b16 %v1810, %v1809
    %1827 = vmatprep.subr.bf16.mxu0 0
    %1828 = vmatpush1.bf16.msra.mxu0 %v1818
    %1829 = vmatprep.subr.bf16.mxu0 0
    %1830 = vmatpush1.bf16.msra.mxu0 %v1817
    %1831 = vmatprep.subr.bf16.mxu0 0
    %1832 = vmatpush1.bf16.msra.mxu0 %v1816
    %1833 = vmatprep.subr.bf16.mxu0 0
    %1834 = vmatpush1.bf16.msra.mxu0 %v1815
    %1835 = vmatprep.subr.bf16.mxu0 0
    %1836 = vmatpush1.bf16.msra.mxu0 %v1814
    %1837 = vmatprep.subr.bf16.mxu0 0
    %1838 = vmatpush1.bf16.msra.mxu0 %v1813
    %1839 = vmatprep.subr.bf16.mxu0 0
    %1840 = vmatpush1.bf16.msra.mxu0 %v1812
    %1841 = vmatprep.subr.bf16.mxu0 0
    %1842 = vmatpush1.bf16.msra.mxu0 %v1811
    %1843 = vmatprep.subr.bf16.mxu0 0
    %1844 = vmatpush2.bf16.msra.mxu0 0
    %1845 = vmatprep.subr.bf16.mxu0 0
    %1846 = vmatpush2.bf16.msra.mxu0 0
    %1847 = vmatprep.subr.bf16.mxu0 0
    %1848 = vmatpush2.bf16.msra.mxu0 0
    %1849 = vmatprep.subr.bf16.mxu0 0
    %1850 = vmatpush2.bf16.msra.mxu0 0
    %1851 = vmatprep.subr.bf16.mxu0 0
    %1852 = vmatpush2.bf16.msra.mxu0 0
    %1853 = vmatprep.subr.bf16.mxu0 0
    %1854 = vmatpush2.bf16.msra.mxu0 0
    %1855 = vmatprep.subr.bf16.mxu0 0
    %1856 = vmatpush2.bf16.msra.mxu0 0
    %1857 = vmatprep.subr.bf16.mxu0 0
    %1858 = vmatpush2.bf16.msra.mxu0 0
    %1859 = vmatprep.mubr.bf16.mxu0 0
    %1860 = vmatmul.mubr.bf16.gmra.mxu0 %v1754
    %v1861 = vpop.f32.mrf.mxu0
    %v1862 = vadd.f32 %v1777, %v1861
    %v1863 = vpop.f32.mrf.mxu0
    %v1864 = vpop.f32.mrf.mxu0
    %v1865 = vadd.f32 %v1777, %v1864
    %v1866 = vpop.f32.mrf.mxu0
    %1867 = vmatprep.mubr.bf16.mxu0 0
    %1868 = vmatmul.mubr.bf16.gmra.mxu0 %v1755
    %v1869 = vpop.f32.mrf.mxu0
    %v1870 = vadd.f32 %v1777, %v1869
    %v1871 = vpop.f32.mrf.mxu0
    %v1872 = vpop.f32.mrf.mxu0
    %v1873 = vpop.f32.mrf.mxu0
    %1874 = vdwg.mxu0
    %v1875 = vadd.f32 %v1586, %v1862
    %v1876 = vadd.f32 %v1587, %v1865
    %v1877 = vadd.f32 %v1588, %v1870
    %1878 = vst.msk [vmem:[#allocation3] sm:$0xff] %vm101, %v1875
    %1879 = vst.msk [vmem:[#allocation3 + $0x8] sm:$0xff] %vm101, %v1876
    %1880 = vst.msk [vmem:[#allocation3 + $0x10] sm:$0x3] %vm275, %v1877
    // Predicated region
    $region70: #{tpu_custom_call.1} parent=1 // pred_check
      _
    $region71: #{tpu_custom_call.1} parent=1 // pred_check_branch
      %1882 = sbr.rel (0) target = $region73
    $region72: #{tpu_custom_call.1} parent=1 // pred_region
      %s1884 = ssub.s32 384, 384
      %1885 = vsyncadd [#allocation4], %s1884
      %s1886 = sshll.u32 [#allocation3], 4
      %s1887 = int_to_ptr.vmem [resolvable:$true] %s1886
      %1892 = dma.vmem_to_hbm [thread:$0]  %s1887, 384, %s17, [#allocation4], 128, 128, 8
    $region73: #{tpu_custom_call.1} parent=1 // pred_fallthru
      _
    // Predicated region
    $region74: #{tpu_custom_call.1} parent=1 // pred_check
      _
    $region75: #{tpu_custom_call.1} parent=1 // pred_check_branch
      %1894 = sbr.rel (0) target = $region77
    $region76: #{tpu_custom_call.1} parent=1 // pred_region
      %1895 = dma.done [#allocation4], 384
    $region77: #{tpu_custom_call.1} parent=1 // pred_fallthru
      _
    %1896 = vsyncpa [#allocation4], 1

</llo_original>
